<compile_context>
chip_gen: v5e
topology: v5e:2x2
jax: 0.10.0
libtpu: 0.0.40
codegen_flags: <defaults>
</compile_context>

<pallas_src>
import functools

import jax
import jax.numpy as jnp
from jax.experimental import pallas as pl
from jax.experimental.pallas import tpu as pltpu

GROWTH = 16        # out_channels_def in the PyTorch module
NUM_LAYERS = 3
NEG_SLOPE = 0.01   # F.leaky_relu default negative_slope
MARGIN = 128       # lane margin: interior starts vreg-aligned, shifted slices stay in bounds


def _make_dense_block_kernel(cin, h, w):
    """Builds the fused DenseBlock kernel for static (cin, H, W)."""
    hp, wp = h + 2, w + 2
    lp = hp * wp                              # padded-flat spatial length (lane axis)
    c_out = cin + NUM_LAYERS * GROWTH
    chans = [cin + GROWTH * l for l in range(NUM_LAYERS)]   # conv input channels
    k_total = 9 * chans[-1]                   # im2col rows needed by the deepest layer
    c_buf = max(cin, GROWTH)                  # staging buffer only holds the newest group
    taps = [(dh, dw) for dh in (-1, 0, 1) for dw in (-1, 0, 1)]

    def kernel(x_ref, w0_ref, w1_ref, w2_ref, b0_ref, b1_ref, b2_ref,
               mask_ref, o_ref, buf_ref, im2col_ref):
        w_refs = (w0_ref, w1_ref, w2_ref)
        b_refs = (b0_ref, b1_ref, b2_ref)
        mask = mask_ref[...]                  # (1, lp): 1 interior, 0 padding ring

        # Zero the margined staging buffer; margins are never written afterwards,
        # so out-of-frame tap reads see exact zeros.  Unconditional: with
        # "parallel" grid semantics each core has its own scratch instance.
        buf_ref[...] = jnp.zeros_like(buf_ref)

        def emit_group(c_g, row_base):
            """Append the 9 shifted copies (one per conv tap) of the c_g channels
            currently staged in buf rows [0:c_g] to the persistent im2col matrix.
            Row order within the group: tap-major, channel-minor."""
            for t, (dh, dw) in enumerate(taps):
                off = MARGIN + dh * wp + dw
                im2col_ref[row_base + t * c_g:row_base + (t + 1) * c_g, :] = (
                    buf_ref[0:c_g, off:off + lp])
            return row_base + 9 * c_g

        # Input channels: pass through to the output, stage, emit im2col group 0.
        x = x_ref[0]                          # (cin, lp), ring already zero-padded
        o_ref[0, 0:cin, :] = x
        buf_ref[0:cin, MARGIN:MARGIN + lp] = x
        rows = emit_group(cin, 0)

        for l in range(NUM_LAYERS):
            cl = chans[l]
            # One GEMM per layer over the already-materialised im2col rows:
            # (16, 9*cl) @ (9*cl, lp) on the MXU, f32 accumulation.
            y = jnp.dot(w_refs[l][...], im2col_ref[0:9 * cl, :],
                        preferred_element_type=jnp.float32)
            y = y + b_refs[l][...]                    # (16, 1) broadcast over lanes
            y = jnp.where(y > 0, y, NEG_SLOPE * y)    # leaky_relu, slope 0.01
            y = y * mask                              # keep zero-padding invariant

            # "concat": append the 16 new channels to the output block; stage them
            # (reusing buf rows 0:16) and emit only *their* 9 shifted copies --
            # earlier groups' im2col rows are reused, never recopied.
            o_ref[0, cl:cl + GROWTH, :] = y.astype(o_ref.dtype)
            if l + 1 < NUM_LAYERS:
                buf_ref[0:GROWTH, MARGIN:MARGIN + lp] = y
                rows = emit_group(GROWTH, rows)

    return kernel, lp, c_out, c_buf, k_total


def _flatten_weight(wt, cin):
    """Flatten OIHW conv weight (16, C_l, 3, 3) -> (16, 9*C_l) matching the
    group-major / tap-major / channel-minor im2col row order used in-kernel."""
    co, c_l, kh, kw = wt.shape
    # channel-group sizes along the dense concat: [cin, 16, 16, ...]
    sizes, rem = [], c_l
    sizes.append(min(cin, rem)); rem -= sizes[0]
    while rem > 0:
        sizes.append(min(GROWTH, rem)); rem -= sizes[-1]
    parts, start = [], 0
    for c_g in sizes:
        sl = wt[:, start:start + c_g]                             # (16, c_g, 3, 3)
        parts.append(jnp.transpose(sl, (0, 2, 3, 1)).reshape(co, kh * kw * c_g))
        start += c_g
    return jnp.concatenate(parts, axis=1).astype(jnp.float32)


def dense_block_forward(x_nchw, params):
    """Fused DenseBlock forward. x_nchw: (N, C_in, H, W) float32 (PyTorch layout).

    params: list of 3 tuples (w, b) with w in OIHW layout (16, C_l, 3, 3), b (16,).
    Returns (N, C_in + 48, H, W).
    """
    n, cin, h, w = x_nchw.shape
    assert len(params) == NUM_LAYERS
    # TODO(synk): only kernel_size=3, stride=1, padding=1 (the configuration the
    # DenseBlock module actually uses) is implemented.
    for (wt, _) in params:
        assert wt.shape[2:] == (3, 3) and wt.shape[0] == GROWTH

    kernel, lp, c_out, c_buf, k_total = _make_dense_block_kernel(cin, h, w)
    hp, wp = h + 2, w + 2

    # One-time, tiny zero-pad + flatten of the original input into the
    # padded-flat layout.  All deeper layers are padded in-kernel for free.
    x_pf = jnp.pad(x_nchw, ((0, 0), (0, 0), (1, 1), (1, 1))).reshape(n, cin, lp)

    # MXU-ready operands: group-ordered (16, 9*C_l) weights and (16, 1) biases.
    w_mats = [_flatten_weight(wt, cin) for (wt, _) in params]
    b_mats = [bt.reshape(GROWTH, 1).astype(jnp.float32) for (_, bt) in params]

    # Interior mask: 1 inside the HxW frame, 0 on the padding ring.
    mask = jnp.zeros((hp, wp), jnp.float32).at[1:hp - 1, 1:wp - 1].set(1.0)
    mask = mask.reshape(1, lp)

    out_pf = pl.pallas_call(
        kernel,
        out_shape=jax.ShapeDtypeStruct((n, c_out, lp), x_nchw.dtype),
        grid_spec=pltpu.PrefetchScalarGridSpec(
            num_scalar_prefetch=0,
            grid=(n,),
            in_specs=(
                [pl.BlockSpec((1, cin, lp), lambda i: (i, 0, 0))]
                + [pl.BlockSpec(wm.shape, lambda i: (0, 0)) for wm in w_mats]
                + [pl.BlockSpec((GROWTH, 1), lambda i: (0, 0))] * NUM_LAYERS
                + [pl.BlockSpec((1, lp), lambda i: (0, 0))]
            ),
            out_specs=pl.BlockSpec((1, c_out, lp), lambda i: (i, 0, 0)),
            scratch_shapes=[
                pltpu.VMEM((c_buf, 2 * MARGIN + lp), jnp.float32),  # margined staging buf
                pltpu.VMEM((k_total, lp), jnp.float32),             # persistent im2col
            ],
        ),
        compiler_params=pltpu.CompilerParams(
            dimension_semantics=("parallel",),            # feeds both TCs on v7x
        ),
    )(x_pf, *w_mats, *b_mats, mask)

    # Strip the padding ring; reshape is contiguous (free), slice is tiny.
    return out_pf.reshape(n, c_out, hp, wp)[:, :, 1:hp - 1, 1:wp - 1]


def init_dense_block_params(key, in_channels, kernel_size=3, growth=GROWTH):
    """Deterministic params mimicking nn.Conv2d default init, OIHW layout."""
    params = []
    c_in = in_channels
    for _ in range(NUM_LAYERS):
        key, k_w, k_b = jax.random.split(key, 3)
        fan_in = c_in * kernel_size * kernel_size
        bound = 1.0 / jnp.sqrt(jnp.float32(fan_in))
        wt = jax.random.uniform(k_w, (growth, c_in, kernel_size, kernel_size),
                                dtype=jnp.float32, minval=-bound, maxval=bound)
        bt = jax.random.uniform(k_b, (growth,), dtype=jnp.float32,
                                minval=-bound, maxval=bound)
        params.append((wt, bt))
        c_in += growth
    return params


def dense_block_reference(x_nchw, params):
    """Pure-JAX (XLA) reference of the PyTorch module, for a correctness check."""
    out = x_nchw
    for (wt, bt) in params:
        y = jax.lax.conv_general_dilated(
            out, wt, window_strides=(1, 1), padding=((1, 1), (1, 1)),
            dimension_numbers=("NCHW", "OIHW", "NCHW"),
            precision=jax.lax.Precision.HIGHEST)
        y = y + bt.reshape(1, -1, 1, 1)
        y = jnp.where(y > 0, y, NEG_SLOPE * y)
        out = jnp.concatenate([out, y], axis=1)
    return out


if __name__ == "__main__":
    key = jax.random.PRNGKey(0)
    k_x, k_p = jax.random.split(key)

    N, C, H, W = 2, 4, 16, 16                      # PyTorch NCHW input (2, 4, 16, 16)
    x = jax.random.normal(k_x, (N, C, H, W), dtype=jnp.float32)
    params = init_dense_block_params(k_p, in_channels=C)

    fwd = jax.jit(functools.partial(dense_block_forward, params=params))
    out = jax.block_until_ready(fwd(x))

    assert out.shape == (N, C + NUM_LAYERS * GROWTH, H, W), out.shape
    assert bool(jnp.all(jnp.isfinite(out)))

    ref = dense_block_reference(x, params)
    err = float(jnp.max(jnp.abs(out - ref)))
    assert err < 2e-2, f"max abs error vs XLA reference: {err}"

    print("KERNEL_OK")
</pallas_src>

<mosaic_0001>
module attributes {stable_mosaic.version = 11 : i64} {
  func.func @kernel(%arg0: i32, %arg1: memref<1x4x324xf32, #tpu.memory_space<vmem>>, %arg2: memref<16x36xf32, #tpu.memory_space<vmem>>, %arg3: memref<16x180xf32, #tpu.memory_space<vmem>>, %arg4: memref<16x324xf32, #tpu.memory_space<vmem>>, %arg5: memref<16x1xf32, #tpu.memory_space<vmem>>, %arg6: memref<16x1xf32, #tpu.memory_space<vmem>>, %arg7: memref<16x1xf32, #tpu.memory_space<vmem>>, %arg8: memref<1x324xf32, #tpu.memory_space<vmem>>, %arg9: memref<1x52x324xf32, #tpu.memory_space<vmem>>, %arg10: memref<16x580xf32, #tpu.memory_space<vmem>>, %arg11: memref<324x324xf32, #tpu.memory_space<vmem>>) attributes {dimension_semantics = [#tpu.dimension_semantics<parallel>], iteration_bounds = array<i64: 2>, scalar_prefetch = 0 : i64, scratch_operands = 2 : i64, tpu.core_type = #tpu.core_type<tc>, window_params = [{transform_indices = @transform_0, window_bounds = array<i64: 1, 4, 324>}, {pipeline_mode = #tpu.pipeline_mode<synchronous>, transform_indices = @transform_1, window_bounds = array<i64: 16, 36>}, {pipeline_mode = #tpu.pipeline_mode<synchronous>, transform_indices = @transform_2, window_bounds = array<i64: 16, 180>}, {pipeline_mode = #tpu.pipeline_mode<synchronous>, transform_indices = @transform_3, window_bounds = array<i64: 16, 324>}, {pipeline_mode = #tpu.pipeline_mode<synchronous>, transform_indices = @transform_4, window_bounds = array<i64: 16, 1>}, {pipeline_mode = #tpu.pipeline_mode<synchronous>, transform_indices = @transform_5, window_bounds = array<i64: 16, 1>}, {pipeline_mode = #tpu.pipeline_mode<synchronous>, transform_indices = @transform_6, window_bounds = array<i64: 16, 1>}, {pipeline_mode = #tpu.pipeline_mode<synchronous>, transform_indices = @transform_7, window_bounds = array<i64: 1, 324>}, {transform_indices = @transform_8, window_bounds = array<i64: 1, 52, 324>}]} {
    %c0 = arith.constant 0 : index
    %c0_0 = arith.constant 0 : index
    %0 = vector.load %arg8[%c0, %c0_0] : memref<1x324xf32, #tpu.memory_space<vmem>>, vector<1x324xf32>
    %cst = arith.constant 0.000000e+00 : f32
    %1 = vector.broadcast %cst : f32 to vector<16x580xf32>
    %c0_1 = arith.constant 0 : index
    %c0_2 = arith.constant 0 : index
    %2 = vector.load %arg10[%c0_1, %c0_2] : memref<16x580xf32, #tpu.memory_space<vmem>>, vector<16x580xf32>
    tpu.vector_store %arg10[%c0_1, %c0_2], %1 {strides = array<i32>} : memref<16x580xf32, #tpu.memory_space<vmem>>, vector<16x580xf32>,
    %c0_3 = arith.constant 0 : index
    %c0_4 = arith.constant 0 : index
    %c0_5 = arith.constant 0 : index
    %3 = vector.load %arg1[%c0_3, %c0_4, %c0_5] : memref<1x4x324xf32, #tpu.memory_space<vmem>>, vector<1x4x324xf32>
    %4 = vector.shape_cast %3 : vector<1x4x324xf32> to vector<4x324xf32>
    %c0_6 = arith.constant 0 : index
    %c0_7 = arith.constant 0 : index
    %c0_8 = arith.constant 0 : index
    %5 = vector.load %arg9[%c0_6, %c0_7, %c0_8] : memref<1x52x324xf32, #tpu.memory_space<vmem>>, vector<1x4x324xf32>
    %6 = vector.shape_cast %5 : vector<1x4x324xf32> to vector<4x324xf32>
    %7 = vector.shape_cast %4 : vector<4x324xf32> to vector<1x4x324xf32>
    tpu.vector_store %arg9[%c0_6, %c0_7, %c0_8], %7 {strides = array<i32>} : memref<1x52x324xf32, #tpu.memory_space<vmem>>, vector<1x4x324xf32>,
    %c0_9 = arith.constant 0 : index
    %c128 = arith.constant 128 : index
    %8 = vector.load %arg10[%c0_9, %c128] : memref<16x580xf32, #tpu.memory_space<vmem>>, vector<4x324xf32>
    tpu.vector_store %arg10[%c0_9, %c128], %4 {strides = array<i32>} : memref<16x580xf32, #tpu.memory_space<vmem>>, vector<4x324xf32>,
    %c0_10 = arith.constant 0 : index
    %c109 = arith.constant 109 : index
    %9 = vector.load %arg10[%c0_10, %c109] : memref<16x580xf32, #tpu.memory_space<vmem>>, vector<4x324xf32>
    %c0_11 = arith.constant 0 : index
    %c0_12 = arith.constant 0 : index
    %10 = vector.load %arg11[%c0_11, %c0_12] : memref<324x324xf32, #tpu.memory_space<vmem>>, vector<4x324xf32>
    tpu.vector_store %arg11[%c0_11, %c0_12], %9 {strides = array<i32>} : memref<324x324xf32, #tpu.memory_space<vmem>>, vector<4x324xf32>,
    %c0_13 = arith.constant 0 : index
    %c110 = arith.constant 110 : index
    %11 = vector.load %arg10[%c0_13, %c110] : memref<16x580xf32, #tpu.memory_space<vmem>>, vector<4x324xf32>
    %c4 = arith.constant 4 : index
    %c0_14 = arith.constant 0 : index
    %12 = vector.load %arg11[%c4, %c0_14] : memref<324x324xf32, #tpu.memory_space<vmem>>, vector<4x324xf32>
    tpu.vector_store %arg11[%c4, %c0_14], %11 {strides = array<i32>} : memref<324x324xf32, #tpu.memory_space<vmem>>, vector<4x324xf32>,
    %c0_15 = arith.constant 0 : index
    %c111 = arith.constant 111 : index
    %13 = vector.load %arg10[%c0_15, %c111] : memref<16x580xf32, #tpu.memory_space<vmem>>, vector<4x324xf32>
    %c8 = arith.constant 8 : index
    %c0_16 = arith.constant 0 : index
    %14 = vector.load %arg11[%c8, %c0_16] : memref<324x324xf32, #tpu.memory_space<vmem>>, vector<4x324xf32>
    tpu.vector_store %arg11[%c8, %c0_16], %13 {strides = array<i32>} : memref<324x324xf32, #tpu.memory_space<vmem>>, vector<4x324xf32>,
    %c0_17 = arith.constant 0 : index
    %c127 = arith.constant 127 : index
    %15 = vector.load %arg10[%c0_17, %c127] : memref<16x580xf32, #tpu.memory_space<vmem>>, vector<4x324xf32>
    %c12 = arith.constant 12 : index
    %c0_18 = arith.constant 0 : index
    %16 = vector.load %arg11[%c12, %c0_18] : memref<324x324xf32, #tpu.memory_space<vmem>>, vector<4x324xf32>
    tpu.vector_store %arg11[%c12, %c0_18], %15 {strides = array<i32>} : memref<324x324xf32, #tpu.memory_space<vmem>>, vector<4x324xf32>,
    %c0_19 = arith.constant 0 : index
    %c128_20 = arith.constant 128 : index
    %17 = vector.load %arg10[%c0_19, %c128_20] : memref<16x580xf32, #tpu.memory_space<vmem>>, vector<4x324xf32>
    %c16 = arith.constant 16 : index
    %c0_21 = arith.constant 0 : index
    %18 = vector.load %arg11[%c16, %c0_21] : memref<324x324xf32, #tpu.memory_space<vmem>>, vector<4x324xf32>
    tpu.vector_store %arg11[%c16, %c0_21], %17 {strides = array<i32>} : memref<324x324xf32, #tpu.memory_space<vmem>>, vector<4x324xf32>,
    %c0_22 = arith.constant 0 : index
    %c129 = arith.constant 129 : index
    %19 = vector.load %arg10[%c0_22, %c129] : memref<16x580xf32, #tpu.memory_space<vmem>>, vector<4x324xf32>
    %c20 = arith.constant 20 : index
    %c0_23 = arith.constant 0 : index
    %20 = vector.load %arg11[%c20, %c0_23] : memref<324x324xf32, #tpu.memory_space<vmem>>, vector<4x324xf32>
    tpu.vector_store %arg11[%c20, %c0_23], %19 {strides = array<i32>} : memref<324x324xf32, #tpu.memory_space<vmem>>, vector<4x324xf32>,
    %c0_24 = arith.constant 0 : index
    %c145 = arith.constant 145 : index
    %21 = vector.load %arg10[%c0_24, %c145] : memref<16x580xf32, #tpu.memory_space<vmem>>, vector<4x324xf32>
    %c24 = arith.constant 24 : index
    %c0_25 = arith.constant 0 : index
    %22 = vector.load %arg11[%c24, %c0_25] : memref<324x324xf32, #tpu.memory_space<vmem>>, vector<4x324xf32>
    tpu.vector_store %arg11[%c24, %c0_25], %21 {strides = array<i32>} : memref<324x324xf32, #tpu.memory_space<vmem>>, vector<4x324xf32>,
    %c0_26 = arith.constant 0 : index
    %c146 = arith.constant 146 : index
    %23 = vector.load %arg10[%c0_26, %c146] : memref<16x580xf32, #tpu.memory_space<vmem>>, vector<4x324xf32>
    %c28 = arith.constant 28 : index
    %c0_27 = arith.constant 0 : index
    %24 = vector.load %arg11[%c28, %c0_27] : memref<324x324xf32, #tpu.memory_space<vmem>>, vector<4x324xf32>
    tpu.vector_store %arg11[%c28, %c0_27], %23 {strides = array<i32>} : memref<324x324xf32, #tpu.memory_space<vmem>>, vector<4x324xf32>,
    %c0_28 = arith.constant 0 : index
    %c147 = arith.constant 147 : index
    %25 = vector.load %arg10[%c0_28, %c147] : memref<16x580xf32, #tpu.memory_space<vmem>>, vector<4x324xf32>
    %c32 = arith.constant 32 : index
    %c0_29 = arith.constant 0 : index
    %26 = vector.load %arg11[%c32, %c0_29] : memref<324x324xf32, #tpu.memory_space<vmem>>, vector<4x324xf32>
    tpu.vector_store %arg11[%c32, %c0_29], %25 {strides = array<i32>} : memref<324x324xf32, #tpu.memory_space<vmem>>, vector<4x324xf32>,
    %c0_30 = arith.constant 0 : index
    %c0_31 = arith.constant 0 : index
    %27 = vector.load %arg2[%c0_30, %c0_31] : memref<16x36xf32, #tpu.memory_space<vmem>>, vector<16x36xf32>
    %c0_32 = arith.constant 0 : index
    %c0_33 = arith.constant 0 : index
    %28 = vector.load %arg11[%c0_32, %c0_33] : memref<324x324xf32, #tpu.memory_space<vmem>>, vector<36x324xf32>
    %cst_34 = arith.constant dense<0.000000e+00> : vector<16x324xf32>
    %29 = tpu.matmul %27, %28, %cst_34 {dimension_numbers = #tpu.dot_dimension_numbers<[1], [0], [0], [1], [0, 0, 1, 1], [], []>} : vector<16x36xf32>, vector<36x324xf32>, vector<16x324xf32> -> vector<16x324xf32>
    %c0_35 = arith.constant 0 : index
    %c0_36 = arith.constant 0 : index
    %30 = vector.load %arg5[%c0_35, %c0_36] : memref<16x1xf32, #tpu.memory_space<vmem>>, vector<16x1xf32>
    %31 = vector.broadcast %30 : vector<16x1xf32> to vector<16x324xf32>
    %32 = arith.addf %29, %31 : vector<16x324xf32>
    %cst_37 = arith.constant 0.000000e+00 : f32
    %33 = vector.broadcast %cst_37 : f32 to vector<16x324xf32>
    %34 = arith.cmpf ogt, %32, %33 : vector<16x324xf32>
    %cst_38 = arith.constant 0.00999999977 : f32
    %35 = vector.broadcast %cst_38 : f32 to vector<16x324xf32>
    %36 = arith.mulf %35, %32 : vector<16x324xf32>
    %37 = arith.select %34, %32, %36 : vector<16x324xi1>, vector<16x324xf32>
    %38 = vector.broadcast %0 : vector<1x324xf32> to vector<16x324xf32>
    %39 = arith.mulf %37, %38 : vector<16x324xf32>
    %c0_39 = arith.constant 0 : index
    %c4_40 = arith.constant 4 : index
    %c0_41 = arith.constant 0 : index
    %40 = vector.load %arg9[%c0_39, %c4_40, %c0_41] : memref<1x52x324xf32, #tpu.memory_space<vmem>>, vector<1x16x324xf32>
    %41 = vector.shape_cast %40 : vector<1x16x324xf32> to vector<16x324xf32>
    %42 = vector.shape_cast %39 : vector<16x324xf32> to vector<1x16x324xf32>
    tpu.vector_store %arg9[%c0_39, %c4_40, %c0_41], %42 {strides = array<i32>} : memref<1x52x324xf32, #tpu.memory_space<vmem>>, vector<1x16x324xf32>,
    %c0_42 = arith.constant 0 : index
    %c128_43 = arith.constant 128 : index
    %43 = vector.load %arg10[%c0_42, %c128_43] : memref<16x580xf32, #tpu.memory_space<vmem>>, vector<16x324xf32>
    tpu.vector_store %arg10[%c0_42, %c128_43], %39 {strides = array<i32>} : memref<16x580xf32, #tpu.memory_space<vmem>>, vector<16x324xf32>,
    %c0_44 = arith.constant 0 : index
    %c109_45 = arith.constant 109 : index
    %44 = vector.load %arg10[%c0_44, %c109_45] : memref<16x580xf32, #tpu.memory_space<vmem>>, vector<16x324xf32>
    %c36 = arith.constant 36 : index
    %c0_46 = arith.constant 0 : index
    %45 = vector.load %arg11[%c36, %c0_46] : memref<324x324xf32, #tpu.memory_space<vmem>>, vector<16x324xf32>
    tpu.vector_store %arg11[%c36, %c0_46], %44 {strides = array<i32>} : memref<324x324xf32, #tpu.memory_space<vmem>>, vector<16x324xf32>,
    %c0_47 = arith.constant 0 : index
    %c110_48 = arith.constant 110 : index
    %46 = vector.load %arg10[%c0_47, %c110_48] : memref<16x580xf32, #tpu.memory_space<vmem>>, vector<16x324xf32>
    %c52 = arith.constant 52 : index
    %c0_49 = arith.constant 0 : index
    %47 = vector.load %arg11[%c52, %c0_49] : memref<324x324xf32, #tpu.memory_space<vmem>>, vector<16x324xf32>
    tpu.vector_store %arg11[%c52, %c0_49], %46 {strides = array<i32>} : memref<324x324xf32, #tpu.memory_space<vmem>>, vector<16x324xf32>,
    %c0_50 = arith.constant 0 : index
    %c111_51 = arith.constant 111 : index
    %48 = vector.load %arg10[%c0_50, %c111_51] : memref<16x580xf32, #tpu.memory_space<vmem>>, vector<16x324xf32>
    %c68 = arith.constant 68 : index
    %c0_52 = arith.constant 0 : index
    %49 = vector.load %arg11[%c68, %c0_52] : memref<324x324xf32, #tpu.memory_space<vmem>>, vector<16x324xf32>
    tpu.vector_store %arg11[%c68, %c0_52], %48 {strides = array<i32>} : memref<324x324xf32, #tpu.memory_space<vmem>>, vector<16x324xf32>,
    %c0_53 = arith.constant 0 : index
    %c127_54 = arith.constant 127 : index
    %50 = vector.load %arg10[%c0_53, %c127_54] : memref<16x580xf32, #tpu.memory_space<vmem>>, vector<16x324xf32>
    %c84 = arith.constant 84 : index
    %c0_55 = arith.constant 0 : index
    %51 = vector.load %arg11[%c84, %c0_55] : memref<324x324xf32, #tpu.memory_space<vmem>>, vector<16x324xf32>
    tpu.vector_store %arg11[%c84, %c0_55], %50 {strides = array<i32>} : memref<324x324xf32, #tpu.memory_space<vmem>>, vector<16x324xf32>,
    %c0_56 = arith.constant 0 : index
    %c128_57 = arith.constant 128 : index
    %52 = vector.load %arg10[%c0_56, %c128_57] : memref<16x580xf32, #tpu.memory_space<vmem>>, vector<16x324xf32>
    %c100 = arith.constant 100 : index
    %c0_58 = arith.constant 0 : index
    %53 = vector.load %arg11[%c100, %c0_58] : memref<324x324xf32, #tpu.memory_space<vmem>>, vector<16x324xf32>
    tpu.vector_store %arg11[%c100, %c0_58], %52 {strides = array<i32>} : memref<324x324xf32, #tpu.memory_space<vmem>>, vector<16x324xf32>,
    %c0_59 = arith.constant 0 : index
    %c129_60 = arith.constant 129 : index
    %54 = vector.load %arg10[%c0_59, %c129_60] : memref<16x580xf32, #tpu.memory_space<vmem>>, vector<16x324xf32>
    %c116 = arith.constant 116 : index
    %c0_61 = arith.constant 0 : index
    %55 = vector.load %arg11[%c116, %c0_61] : memref<324x324xf32, #tpu.memory_space<vmem>>, vector<16x324xf32>
    tpu.vector_store %arg11[%c116, %c0_61], %54 {strides = array<i32>} : memref<324x324xf32, #tpu.memory_space<vmem>>, vector<16x324xf32>,
    %c0_62 = arith.constant 0 : index
    %c145_63 = arith.constant 145 : index
    %56 = vector.load %arg10[%c0_62, %c145_63] : memref<16x580xf32, #tpu.memory_space<vmem>>, vector<16x324xf32>
    %c132 = arith.constant 132 : index
    %c0_64 = arith.constant 0 : index
    %57 = vector.load %arg11[%c132, %c0_64] : memref<324x324xf32, #tpu.memory_space<vmem>>, vector<16x324xf32>
    tpu.vector_store %arg11[%c132, %c0_64], %56 {strides = array<i32>} : memref<324x324xf32, #tpu.memory_space<vmem>>, vector<16x324xf32>,
    %c0_65 = arith.constant 0 : index
    %c146_66 = arith.constant 146 : index
    %58 = vector.load %arg10[%c0_65, %c146_66] : memref<16x580xf32, #tpu.memory_space<vmem>>, vector<16x324xf32>
    %c148 = arith.constant 148 : index
    %c0_67 = arith.constant 0 : index
    %59 = vector.load %arg11[%c148, %c0_67] : memref<324x324xf32, #tpu.memory_space<vmem>>, vector<16x324xf32>
    tpu.vector_store %arg11[%c148, %c0_67], %58 {strides = array<i32>} : memref<324x324xf32, #tpu.memory_space<vmem>>, vector<16x324xf32>,
    %c0_68 = arith.constant 0 : index
    %c147_69 = arith.constant 147 : index
    %60 = vector.load %arg10[%c0_68, %c147_69] : memref<16x580xf32, #tpu.memory_space<vmem>>, vector<16x324xf32>
    %c164 = arith.constant 164 : index
    %c0_70 = arith.constant 0 : index
    %61 = vector.load %arg11[%c164, %c0_70] : memref<324x324xf32, #tpu.memory_space<vmem>>, vector<16x324xf32>
    tpu.vector_store %arg11[%c164, %c0_70], %60 {strides = array<i32>} : memref<324x324xf32, #tpu.memory_space<vmem>>, vector<16x324xf32>,
    %c0_71 = arith.constant 0 : index
    %c0_72 = arith.constant 0 : index
    %62 = vector.load %arg3[%c0_71, %c0_72] : memref<16x180xf32, #tpu.memory_space<vmem>>, vector<16x180xf32>
    %c0_73 = arith.constant 0 : index
    %c0_74 = arith.constant 0 : index
    %63 = vector.load %arg11[%c0_73, %c0_74] : memref<324x324xf32, #tpu.memory_space<vmem>>, vector<180x324xf32>
    %cst_75 = arith.constant dense<0.000000e+00> : vector<16x324xf32>
    %64 = tpu.matmul %62, %63, %cst_75 {dimension_numbers = #tpu.dot_dimension_numbers<[1], [0], [0], [1], [0, 0, 1, 1], [], []>} : vector<16x180xf32>, vector<180x324xf32>, vector<16x324xf32> -> vector<16x324xf32>
    %c0_76 = arith.constant 0 : index
    %c0_77 = arith.constant 0 : index
    %65 = vector.load %arg6[%c0_76, %c0_77] : memref<16x1xf32, #tpu.memory_space<vmem>>, vector<16x1xf32>
    %66 = vector.broadcast %65 : vector<16x1xf32> to vector<16x324xf32>
    %67 = arith.addf %64, %66 : vector<16x324xf32>
    %cst_78 = arith.constant 0.000000e+00 : f32
    %68 = vector.broadcast %cst_78 : f32 to vector<16x324xf32>
    %69 = arith.cmpf ogt, %67, %68 : vector<16x324xf32>
    %cst_79 = arith.constant 0.00999999977 : f32
    %70 = vector.broadcast %cst_79 : f32 to vector<16x324xf32>
    %71 = arith.mulf %70, %67 : vector<16x324xf32>
    %72 = arith.select %69, %67, %71 : vector<16x324xi1>, vector<16x324xf32>
    %73 = vector.broadcast %0 : vector<1x324xf32> to vector<16x324xf32>
    %74 = arith.mulf %72, %73 : vector<16x324xf32>
    %c0_80 = arith.constant 0 : index
    %c20_81 = arith.constant 20 : index
    %c0_82 = arith.constant 0 : index
    %75 = vector.load %arg9[%c0_80, %c20_81, %c0_82] : memref<1x52x324xf32, #tpu.memory_space<vmem>>, vector<1x16x324xf32>
    %76 = vector.shape_cast %75 : vector<1x16x324xf32> to vector<16x324xf32>
    %77 = vector.shape_cast %74 : vector<16x324xf32> to vector<1x16x324xf32>
    tpu.vector_store %arg9[%c0_80, %c20_81, %c0_82], %77 {strides = array<i32>} : memref<1x52x324xf32, #tpu.memory_space<vmem>>, vector<1x16x324xf32>,
    %c0_83 = arith.constant 0 : index
    %c128_84 = arith.constant 128 : index
    %78 = vector.load %arg10[%c0_83, %c128_84] : memref<16x580xf32, #tpu.memory_space<vmem>>, vector<16x324xf32>
    tpu.vector_store %arg10[%c0_83, %c128_84], %74 {strides = array<i32>} : memref<16x580xf32, #tpu.memory_space<vmem>>, vector<16x324xf32>,
    %c0_85 = arith.constant 0 : index
    %c109_86 = arith.constant 109 : index
    %79 = vector.load %arg10[%c0_85, %c109_86] : memref<16x580xf32, #tpu.memory_space<vmem>>, vector<16x324xf32>
    %c180 = arith.constant 180 : index
    %c0_87 = arith.constant 0 : index
    %80 = vector.load %arg11[%c180, %c0_87] : memref<324x324xf32, #tpu.memory_space<vmem>>, vector<16x324xf32>
    tpu.vector_store %arg11[%c180, %c0_87], %79 {strides = array<i32>} : memref<324x324xf32, #tpu.memory_space<vmem>>, vector<16x324xf32>,
    %c0_88 = arith.constant 0 : index
    %c110_89 = arith.constant 110 : index
    %81 = vector.load %arg10[%c0_88, %c110_89] : memref<16x580xf32, #tpu.memory_space<vmem>>, vector<16x324xf32>
    %c196 = arith.constant 196 : index
    %c0_90 = arith.constant 0 : index
    %82 = vector.load %arg11[%c196, %c0_90] : memref<324x324xf32, #tpu.memory_space<vmem>>, vector<16x324xf32>
    tpu.vector_store %arg11[%c196, %c0_90], %81 {strides = array<i32>} : memref<324x324xf32, #tpu.memory_space<vmem>>, vector<16x324xf32>,
    %c0_91 = arith.constant 0 : index
    %c111_92 = arith.constant 111 : index
    %83 = vector.load %arg10[%c0_91, %c111_92] : memref<16x580xf32, #tpu.memory_space<vmem>>, vector<16x324xf32>
    %c212 = arith.constant 212 : index
    %c0_93 = arith.constant 0 : index
    %84 = vector.load %arg11[%c212, %c0_93] : memref<324x324xf32, #tpu.memory_space<vmem>>, vector<16x324xf32>
    tpu.vector_store %arg11[%c212, %c0_93], %83 {strides = array<i32>} : memref<324x324xf32, #tpu.memory_space<vmem>>, vector<16x324xf32>,
    %c0_94 = arith.constant 0 : index
    %c127_95 = arith.constant 127 : index
    %85 = vector.load %arg10[%c0_94, %c127_95] : memref<16x580xf32, #tpu.memory_space<vmem>>, vector<16x324xf32>
    %c228 = arith.constant 228 : index
    %c0_96 = arith.constant 0 : index
    %86 = vector.load %arg11[%c228, %c0_96] : memref<324x324xf32, #tpu.memory_space<vmem>>, vector<16x324xf32>
    tpu.vector_store %arg11[%c228, %c0_96], %85 {strides = array<i32>} : memref<324x324xf32, #tpu.memory_space<vmem>>, vector<16x324xf32>,
    %c0_97 = arith.constant 0 : index
    %c128_98 = arith.constant 128 : index
    %87 = vector.load %arg10[%c0_97, %c128_98] : memref<16x580xf32, #tpu.memory_space<vmem>>, vector<16x324xf32>
    %c244 = arith.constant 244 : index
    %c0_99 = arith.constant 0 : index
    %88 = vector.load %arg11[%c244, %c0_99] : memref<324x324xf32, #tpu.memory_space<vmem>>, vector<16x324xf32>
    tpu.vector_store %arg11[%c244, %c0_99], %87 {strides = array<i32>} : memref<324x324xf32, #tpu.memory_space<vmem>>, vector<16x324xf32>,
    %c0_100 = arith.constant 0 : index
    %c129_101 = arith.constant 129 : index
    %89 = vector.load %arg10[%c0_100, %c129_101] : memref<16x580xf32, #tpu.memory_space<vmem>>, vector<16x324xf32>
    %c260 = arith.constant 260 : index
    %c0_102 = arith.constant 0 : index
    %90 = vector.load %arg11[%c260, %c0_102] : memref<324x324xf32, #tpu.memory_space<vmem>>, vector<16x324xf32>
    tpu.vector_store %arg11[%c260, %c0_102], %89 {strides = array<i32>} : memref<324x324xf32, #tpu.memory_space<vmem>>, vector<16x324xf32>,
    %c0_103 = arith.constant 0 : index
    %c145_104 = arith.constant 145 : index
    %91 = vector.load %arg10[%c0_103, %c145_104] : memref<16x580xf32, #tpu.memory_space<vmem>>, vector<16x324xf32>
    %c276 = arith.constant 276 : index
    %c0_105 = arith.constant 0 : index
    %92 = vector.load %arg11[%c276, %c0_105] : memref<324x324xf32, #tpu.memory_space<vmem>>, vector<16x324xf32>
    tpu.vector_store %arg11[%c276, %c0_105], %91 {strides = array<i32>} : memref<324x324xf32, #tpu.memory_space<vmem>>, vector<16x324xf32>,
    %c0_106 = arith.constant 0 : index
    %c146_107 = arith.constant 146 : index
    %93 = vector.load %arg10[%c0_106, %c146_107] : memref<16x580xf32, #tpu.memory_space<vmem>>, vector<16x324xf32>
    %c292 = arith.constant 292 : index
    %c0_108 = arith.constant 0 : index
    %94 = vector.load %arg11[%c292, %c0_108] : memref<324x324xf32, #tpu.memory_space<vmem>>, vector<16x324xf32>
    tpu.vector_store %arg11[%c292, %c0_108], %93 {strides = array<i32>} : memref<324x324xf32, #tpu.memory_space<vmem>>, vector<16x324xf32>,
    %c0_109 = arith.constant 0 : index
    %c147_110 = arith.constant 147 : index
    %95 = vector.load %arg10[%c0_109, %c147_110] : memref<16x580xf32, #tpu.memory_space<vmem>>, vector<16x324xf32>
    %c308 = arith.constant 308 : index
    %c0_111 = arith.constant 0 : index
    %96 = vector.load %arg11[%c308, %c0_111] : memref<324x324xf32, #tpu.memory_space<vmem>>, vector<16x324xf32>
    tpu.vector_store %arg11[%c308, %c0_111], %95 {strides = array<i32>} : memref<324x324xf32, #tpu.memory_space<vmem>>, vector<16x324xf32>,
    %c0_112 = arith.constant 0 : index
    %c0_113 = arith.constant 0 : index
    %97 = vector.load %arg4[%c0_112, %c0_113] : memref<16x324xf32, #tpu.memory_space<vmem>>, vector<16x324xf32>
    %c0_114 = arith.constant 0 : index
    %c0_115 = arith.constant 0 : index
    %98 = vector.load %arg11[%c0_114, %c0_115] : memref<324x324xf32, #tpu.memory_space<vmem>>, vector<324x324xf32>
    %cst_116 = arith.constant dense<0.000000e+00> : vector<16x324xf32>
    %99 = tpu.matmul %97, %98, %cst_116 {dimension_numbers = #tpu.dot_dimension_numbers<[1], [0], [0], [1], [0, 0, 1, 1], [], []>} : vector<16x324xf32>, vector<324x324xf32>, vector<16x324xf32> -> vector<16x324xf32>
    %c0_117 = arith.constant 0 : index
    %c0_118 = arith.constant 0 : index
    %100 = vector.load %arg7[%c0_117, %c0_118] : memref<16x1xf32, #tpu.memory_space<vmem>>, vector<16x1xf32>
    %101 = vector.broadcast %100 : vector<16x1xf32> to vector<16x324xf32>
    %102 = arith.addf %99, %101 : vector<16x324xf32>
    %cst_119 = arith.constant 0.000000e+00 : f32
    %103 = vector.broadcast %cst_119 : f32 to vector<16x324xf32>
    %104 = arith.cmpf ogt, %102, %103 : vector<16x324xf32>
    %cst_120 = arith.constant 0.00999999977 : f32
    %105 = vector.broadcast %cst_120 : f32 to vector<16x324xf32>
    %106 = arith.mulf %105, %102 : vector<16x324xf32>
    %107 = arith.select %104, %102, %106 : vector<16x324xi1>, vector<16x324xf32>
    %108 = vector.broadcast %0 : vector<1x324xf32> to vector<16x324xf32>
    %109 = arith.mulf %107, %108 : vector<16x324xf32>
    %c0_121 = arith.constant 0 : index
    %c36_122 = arith.constant 36 : index
    %c0_123 = arith.constant 0 : index
    %110 = vector.load %arg9[%c0_121, %c36_122, %c0_123] : memref<1x52x324xf32, #tpu.memory_space<vmem>>, vector<1x16x324xf32>
    %111 = vector.shape_cast %110 : vector<1x16x324xf32> to vector<16x324xf32>
    %112 = vector.shape_cast %109 : vector<16x324xf32> to vector<1x16x324xf32>
    tpu.vector_store %arg9[%c0_121, %c36_122, %c0_123], %112 {strides = array<i32>} : memref<1x52x324xf32, #tpu.memory_space<vmem>>, vector<1x16x324xf32>,
    return
  }
  func.func @transform_0(%arg0: i32) -> (i32, i32, i32) {
    %c0_i32 = arith.constant 0 : i32
    %c0_i32_0 = arith.constant 0 : i32
    %c0_i32_1 = arith.constant 0 : i32
    return %arg0, %c0_i32, %c0_i32_0 : i32, i32, i32
  }
  func.func @transform_1(%arg0: i32) -> (i32, i32) {
    %c0_i32 = arith.constant 0 : i32
    %c0_i32_0 = arith.constant 0 : i32
    %c0_i32_1 = arith.constant 0 : i32
    return %c0_i32, %c0_i32_0 : i32, i32
  }
  func.func @transform_2(%arg0: i32) -> (i32, i32) {
    %c0_i32 = arith.constant 0 : i32
    %c0_i32_0 = arith.constant 0 : i32
    %c0_i32_1 = arith.constant 0 : i32
    return %c0_i32, %c0_i32_0 : i32, i32
  }
  func.func @transform_3(%arg0: i32) -> (i32, i32) {
    %c0_i32 = arith.constant 0 : i32
    %c0_i32_0 = arith.constant 0 : i32
    %c0_i32_1 = arith.constant 0 : i32
    return %c0_i32, %c0_i32_0 : i32, i32
  }
  func.func @transform_4(%arg0: i32) -> (i32, i32) {
    %c0_i32 = arith.constant 0 : i32
    %c0_i32_0 = arith.constant 0 : i32
    %c0_i32_1 = arith.constant 0 : i32
    return %c0_i32, %c0_i32_0 : i32, i32
  }
  func.func @transform_5(%arg0: i32) -> (i32, i32) {
    %c0_i32 = arith.constant 0 : i32
    %c0_i32_0 = arith.constant 0 : i32
    %c0_i32_1 = arith.constant 0 : i32
    return %c0_i32, %c0_i32_0 : i32, i32
  }
  func.func @transform_6(%arg0: i32) -> (i32, i32) {
    %c0_i32 = arith.constant 0 : i32
    %c0_i32_0 = arith.constant 0 : i32
    %c0_i32_1 = arith.constant 0 : i32
    return %c0_i32, %c0_i32_0 : i32, i32
  }
  func.func @transform_7(%arg0: i32) -> (i32, i32) {
    %c0_i32 = arith.constant 0 : i32
    %c0_i32_0 = arith.constant 0 : i32
    %c0_i32_1 = arith.constant 0 : i32
    return %c0_i32, %c0_i32_0 : i32, i32
  }
  func.func @transform_8(%arg0: i32) -> (i32, i32, i32) {
    %c0_i32 = arith.constant 0 : i32
    %c0_i32_0 = arith.constant 0 : i32
    %c0_i32_1 = arith.constant 0 : i32
    return %arg0, %c0_i32, %c0_i32_0 : i32, i32, i32
  }
}

</mosaic_0001>

<llo_original>
// kernel: dense_block_forward.1
$region0: #{dense_block_forward.1}
  #allocation0 [shape = 'u32[]', space=smem, size = 0x4, offset = 0x4, fixed_abs, tag = 'smem constant byte address 0x4 - core index']
  #allocation1 [shape = 'u32[72,128]{1,0:T(1,128)}', space=vmem, size = 0x9000, scoped, tag = 'internal scratch']
  #allocation2 [shape = 'f32[16,580]{1,0:T(8,128)}', space=vmem, size = 0xa000, scoped, tag = 'scratch operand']
  #allocation3 [shape = 'f32[324,324]{1,0:T(8,128)}', space=vmem, size = 0x7b000, scoped, tag = 'scratch operand']
  %s0 = inlined_call_operand.vmem [shape: f32[2,4,324], index: 0, kind: input, shape index: {}]
  %s1 = inlined_call_operand.vmem [shape: f32[16,36], index: 1, kind: input, shape index: {}]
  %s2 = inlined_call_operand.vmem [shape: f32[16,180], index: 2, kind: input, shape index: {}]
  %s3 = inlined_call_operand.vmem [shape: f32[16,324], index: 3, kind: input, shape index: {}]
  %s4 = inlined_call_operand.vmem [shape: f32[16,1], index: 4, kind: input, shape index: {}]
  %s5 = inlined_call_operand.vmem [shape: f32[16,1], index: 5, kind: input, shape index: {}]
  %s6 = inlined_call_operand.vmem [shape: f32[16,1], index: 6, kind: input, shape index: {}]
  %s7 = inlined_call_operand.vmem [shape: f32[1,324], index: 7, kind: input, shape index: {}]
  %s8 = inlined_call_operand.vmem [shape: f32[2,52,324], index: 8, kind: output, shape index: {}]
  %s9 = sld [smem:[#allocation0]]
  $region65: #{dense_block_forward.1} parent=0
    _
  %s11 = ssub.s32 1, %s9
  %s12 = scalar_select 0, %s11, %s9
  loop: start=0, step=1, limit=4
  $region2: #{dense_block_forward.1} parent=0 // loop_pre_header
    _
  $region3: #{dense_block_forward.1} parent=0 // loop_header
    %s14 = sphi 0, %s18
    %p15 = scmp.ge.s32.totalorder %s14, 4
    %s24 = sphi 0, %s26
    %s27 = sphi 0, %s24
    %s28 = sphi 0, %s27
    %s44 = sphi 0, %s28
    %s48 = sphi 0, %s48
    %s50 = sphi 0, %s48
    %s51 = sphi 0, %s50
    %s65 = sphi 0, %s51
    %s69 = sphi 0, %s69
    %s71 = sphi 0, %s69
    %s72 = sphi 0, %s71
    %s86 = sphi 0, %s72
    %s90 = sphi 0, %s90
    %s92 = sphi 0, %s90
    %s93 = sphi 0, %s92
    %s107 = sphi 0, %s93
    %s111 = sphi 0, %s111
    %s113 = sphi 0, %s111
    %s114 = sphi 0, %s113
    %s128 = sphi 0, %s114
    %s132 = sphi 0, %s132
    %s134 = sphi 0, %s132
    %s135 = sphi 0, %s134
    %s149 = sphi 0, %s135
    %s153 = sphi 0, %s153
    %s155 = sphi 0, %s153
    %s156 = sphi 0, %s155
    %s170 = sphi 0, %s156
    %s174 = sphi 0, %s174
    %s176 = sphi 0, %s174
    %s177 = sphi 0, %s176
    %s191 = sphi 0, %s177
    %s197 = sphi 0, %s199
    %s200 = sphi 0, %s197
    %s201 = sphi 0, %s200
    %s217 = sphi 0, %s201
  $region4: #{dense_block_forward.1} parent=0 // loop_header_branch
    %17 = sbr.rel (%p15) target = $region8
  $region5: #{dense_block_forward.1} parent=0 // loop_body
    %s19 = ssub.s32 %s14, 1
    %s20 = ssub.s32 %s14, 2
    %s21 = sadd.s32 %s14, 1
    %s22 = ssub.s32 %s14, %s21
    %p23 = scmp.eq.s32.totalorder %s22, 0
    %s25 = sadd.s32 %s24, 1
    %s26 = scalar_select %p23, %s24, %s25
    %p29 = pneg %p23
    %p30 = scmp.eq.s32.totalorder %s14, 1
    %p31 = por %p29, %p30
    %p32 = scmp.ne.s32.totalorder %s24, %s27
    %p33 = scmp.eq.s32.totalorder %s14, 0
    %p34 = por %p32, %p33
    %p35 = scmp.ne.s32.totalorder %s24, %s27
    %p36 = scmp.eq.s32.totalorder %s19, 1
    %p37 = por %p35, %p36
    %p38 = scmp.ne.s32.totalorder %s27, %s28
    %p39 = scmp.eq.s32.totalorder %s19, 0
    %p40 = por %p38, %p39
    %p41 = scmp.ne.s32.totalorder %s27, %s28
    %p42 = scmp.eq.s32.totalorder %s20, 1
    %p43 = por %p41, %p42
    %p45 = scmp.ne.s32.totalorder %s28, %s44
    %p46 = scmp.eq.s32.totalorder %s20, 0
    %p47 = por %p45, %p46
    %s49 = sadd.s32 %s48, 1
    %p52 = scmp.eq.s32.totalorder %s14, 1
    %p53 = scmp.ne.s32.totalorder %s48, %s50
    %p54 = scmp.eq.s32.totalorder %s14, 0
    %p55 = por %p53, %p54
    %p56 = scmp.ne.s32.totalorder %s48, %s50
    %p57 = scmp.eq.s32.totalorder %s19, 1
    %p58 = por %p56, %p57
    %p59 = scmp.ne.s32.totalorder %s50, %s51
    %p60 = scmp.eq.s32.totalorder %s19, 0
    %p61 = por %p59, %p60
    %p62 = scmp.ne.s32.totalorder %s50, %s51
    %p63 = scmp.eq.s32.totalorder %s20, 1
    %p64 = por %p62, %p63
    %p66 = scmp.ne.s32.totalorder %s51, %s65
    %p67 = scmp.eq.s32.totalorder %s20, 0
    %p68 = por %p66, %p67
    %s70 = sadd.s32 %s69, 1
    %p73 = scmp.eq.s32.totalorder %s14, 1
    %p74 = scmp.ne.s32.totalorder %s69, %s71
    %p75 = scmp.eq.s32.totalorder %s14, 0
    %p76 = por %p74, %p75
    %p77 = scmp.ne.s32.totalorder %s69, %s71
    %p78 = scmp.eq.s32.totalorder %s19, 1
    %p79 = por %p77, %p78
    %p80 = scmp.ne.s32.totalorder %s71, %s72
    %p81 = scmp.eq.s32.totalorder %s19, 0
    %p82 = por %p80, %p81
    %p83 = scmp.ne.s32.totalorder %s71, %s72
    %p84 = scmp.eq.s32.totalorder %s20, 1
    %p85 = por %p83, %p84
    %p87 = scmp.ne.s32.totalorder %s72, %s86
    %p88 = scmp.eq.s32.totalorder %s20, 0
    %p89 = por %p87, %p88
    %s91 = sadd.s32 %s90, 1
    %p94 = scmp.eq.s32.totalorder %s14, 1
    %p95 = scmp.ne.s32.totalorder %s90, %s92
    %p96 = scmp.eq.s32.totalorder %s14, 0
    %p97 = por %p95, %p96
    %p98 = scmp.ne.s32.totalorder %s90, %s92
    %p99 = scmp.eq.s32.totalorder %s19, 1
    %p100 = por %p98, %p99
    %p101 = scmp.ne.s32.totalorder %s92, %s93
    %p102 = scmp.eq.s32.totalorder %s19, 0
    %p103 = por %p101, %p102
    %p104 = scmp.ne.s32.totalorder %s92, %s93
    %p105 = scmp.eq.s32.totalorder %s20, 1
    %p106 = por %p104, %p105
    %p108 = scmp.ne.s32.totalorder %s93, %s107
    %p109 = scmp.eq.s32.totalorder %s20, 0
    %p110 = por %p108, %p109
    %s112 = sadd.s32 %s111, 1
    %p115 = scmp.eq.s32.totalorder %s14, 1
    %p116 = scmp.ne.s32.totalorder %s111, %s113
    %p117 = scmp.eq.s32.totalorder %s14, 0
    %p118 = por %p116, %p117
    %p119 = scmp.ne.s32.totalorder %s111, %s113
    %p120 = scmp.eq.s32.totalorder %s19, 1
    %p121 = por %p119, %p120
    %p122 = scmp.ne.s32.totalorder %s113, %s114
    %p123 = scmp.eq.s32.totalorder %s19, 0
    %p124 = por %p122, %p123
    %p125 = scmp.ne.s32.totalorder %s113, %s114
    %p126 = scmp.eq.s32.totalorder %s20, 1
    %p127 = por %p125, %p126
    %p129 = scmp.ne.s32.totalorder %s114, %s128
    %p130 = scmp.eq.s32.totalorder %s20, 0
    %p131 = por %p129, %p130
    %s133 = sadd.s32 %s132, 1
    %p136 = scmp.eq.s32.totalorder %s14, 1
    %p137 = scmp.ne.s32.totalorder %s132, %s134
    %p138 = scmp.eq.s32.totalorder %s14, 0
    %p139 = por %p137, %p138
    %p140 = scmp.ne.s32.totalorder %s132, %s134
    %p141 = scmp.eq.s32.totalorder %s19, 1
    %p142 = por %p140, %p141
    %p143 = scmp.ne.s32.totalorder %s134, %s135
    %p144 = scmp.eq.s32.totalorder %s19, 0
    %p145 = por %p143, %p144
    %p146 = scmp.ne.s32.totalorder %s134, %s135
    %p147 = scmp.eq.s32.totalorder %s20, 1
    %p148 = por %p146, %p147
    %p150 = scmp.ne.s32.totalorder %s135, %s149
    %p151 = scmp.eq.s32.totalorder %s20, 0
    %p152 = por %p150, %p151
    %s154 = sadd.s32 %s153, 1
    %p157 = scmp.eq.s32.totalorder %s14, 1
    %p158 = scmp.ne.s32.totalorder %s153, %s155
    %p159 = scmp.eq.s32.totalorder %s14, 0
    %p160 = por %p158, %p159
    %p161 = scmp.ne.s32.totalorder %s153, %s155
    %p162 = scmp.eq.s32.totalorder %s19, 1
    %p163 = por %p161, %p162
    %p164 = scmp.ne.s32.totalorder %s155, %s156
    %p165 = scmp.eq.s32.totalorder %s19, 0
    %p166 = por %p164, %p165
    %p167 = scmp.ne.s32.totalorder %s155, %s156
    %p168 = scmp.eq.s32.totalorder %s20, 1
    %p169 = por %p167, %p168
    %p171 = scmp.ne.s32.totalorder %s156, %s170
    %p172 = scmp.eq.s32.totalorder %s20, 0
    %p173 = por %p171, %p172
    %s175 = sadd.s32 %s174, 1
    %p178 = scmp.eq.s32.totalorder %s14, 1
    %p179 = scmp.ne.s32.totalorder %s174, %s176
    %p180 = scmp.eq.s32.totalorder %s14, 0
    %p181 = por %p179, %p180
    %p182 = scmp.ne.s32.totalorder %s174, %s176
    %p183 = scmp.eq.s32.totalorder %s19, 1
    %p184 = por %p182, %p183
    %p185 = scmp.ne.s32.totalorder %s176, %s177
    %p186 = scmp.eq.s32.totalorder %s19, 0
    %p187 = por %p185, %p186
    %p188 = scmp.ne.s32.totalorder %s176, %s177
    %p189 = scmp.eq.s32.totalorder %s20, 1
    %p190 = por %p188, %p189
    %p192 = scmp.ne.s32.totalorder %s177, %s191
    %p193 = scmp.eq.s32.totalorder %s20, 0
    %p194 = por %p192, %p193
    %s195 = ssub.s32 %s14, %s21
    %p196 = scmp.eq.s32.totalorder %s195, 0
    %s198 = sadd.s32 %s197, 1
    %s199 = scalar_select %p196, %s197, %s198
    %p202 = pneg %p196
    %p203 = scmp.eq.s32.totalorder %s14, 1
    %p204 = por %p202, %p203
    %p205 = scmp.ne.s32.totalorder %s197, %s200
    %p206 = scmp.eq.s32.totalorder %s14, 0
    %p207 = por %p205, %p206
    %p208 = scmp.ne.s32.totalorder %s197, %s200
    %p209 = scmp.eq.s32.totalorder %s19, 1
    %p210 = por %p208, %p209
    %p211 = scmp.ne.s32.totalorder %s200, %s201
    %p212 = scmp.eq.s32.totalorder %s19, 0
    %p213 = por %p211, %p212
    %p214 = scmp.ne.s32.totalorder %s200, %s201
    %p215 = scmp.eq.s32.totalorder %s20, 1
    %p216 = por %p214, %p215
    %p218 = scmp.ne.s32.totalorder %s201, %s217
    %p219 = scmp.eq.s32.totalorder %s20, 0
    %p220 = por %p218, %p219
    %p221 = scmp.le.s32.totalorder 1, %s14
    %p222 = scmp.lt.s32.totalorder %s14, 3
    %p223 = pnand %p221, %p222
    %p224 = pneg %p223
    // Predicated region
    $region9: #{dense_block_forward.1} parent=5 // pred_check
      _
    $region10: #{dense_block_forward.1} parent=5 // pred_check_branch
      %226 = sbr.rel (%p223) target = $region12
    $region11: #{dense_block_forward.1} parent=5 // pred_region
      %s227 = ssub.s32 %s14, 1
      // Predicated region
      $region13: #{dense_block_forward.1} parent=11 // pred_check
        %p228 = pneg %p61
      $region14: #{dense_block_forward.1} parent=11 // pred_check_branch
        %230 = sbr.rel (%p228) target = $region16
      $region15: #{dense_block_forward.1} parent=11 // pred_region
        _
      $region16: #{dense_block_forward.1} parent=11 // pred_fallthru
        _
      // Predicated region
      $region17: #{dense_block_forward.1} parent=11 // pred_check
        %p231 = pneg %p82
      $region18: #{dense_block_forward.1} parent=11 // pred_check_branch
        %233 = sbr.rel (%p231) target = $region20
      $region19: #{dense_block_forward.1} parent=11 // pred_region
        _
      $region20: #{dense_block_forward.1} parent=11 // pred_fallthru
        _
      // Predicated region
      $region21: #{dense_block_forward.1} parent=11 // pred_check
        %p234 = pneg %p103
      $region22: #{dense_block_forward.1} parent=11 // pred_check_branch
        %236 = sbr.rel (%p234) target = $region24
      $region23: #{dense_block_forward.1} parent=11 // pred_region
        _
      $region24: #{dense_block_forward.1} parent=11 // pred_fallthru
        _
      // Predicated region
      $region25: #{dense_block_forward.1} parent=11 // pred_check
        %p237 = pneg %p124
      $region26: #{dense_block_forward.1} parent=11 // pred_check_branch
        %239 = sbr.rel (%p237) target = $region28
      $region27: #{dense_block_forward.1} parent=11 // pred_region
        _
      $region28: #{dense_block_forward.1} parent=11 // pred_fallthru
        _
      // Predicated region
      $region29: #{dense_block_forward.1} parent=11 // pred_check
        %p240 = pneg %p145
      $region30: #{dense_block_forward.1} parent=11 // pred_check_branch
        %242 = sbr.rel (%p240) target = $region32
      $region31: #{dense_block_forward.1} parent=11 // pred_region
        _
      $region32: #{dense_block_forward.1} parent=11 // pred_fallthru
        _
      // Predicated region
      $region33: #{dense_block_forward.1} parent=11 // pred_check
        %p243 = pneg %p166
      $region34: #{dense_block_forward.1} parent=11 // pred_check_branch
        %245 = sbr.rel (%p243) target = $region36
      $region35: #{dense_block_forward.1} parent=11 // pred_region
        _
      $region36: #{dense_block_forward.1} parent=11 // pred_fallthru
        _
      // Predicated region
      $region37: #{dense_block_forward.1} parent=11 // pred_check
        %p246 = pneg %p187
      $region38: #{dense_block_forward.1} parent=11 // pred_check_branch
        %248 = sbr.rel (%p246) target = $region40
      $region39: #{dense_block_forward.1} parent=11 // pred_region
        _
      $region40: #{dense_block_forward.1} parent=11 // pred_fallthru
        _
    $region12: #{dense_block_forward.1} parent=5 // pred_fallthru
      _
    %p249 = scmp.lt.s32.totalorder %s14, 2
    // Predicated region
    $region41: #{dense_block_forward.1} parent=5 // pred_check
      %p250 = pneg %p249
    $region42: #{dense_block_forward.1} parent=5 // pred_check_branch
      %252 = sbr.rel (%p250) target = $region44
    $region43: #{dense_block_forward.1} parent=5 // pred_region
      // Predicated region
      $region45: #{dense_block_forward.1} parent=43 // pred_check
        %p253 = pneg %p34
      $region46: #{dense_block_forward.1} parent=43 // pred_check_branch
        %255 = sbr.rel (%p253) target = $region48
      $region47: #{dense_block_forward.1} parent=43 // pred_region
        %p256 = scmp.lt.s32.totalorder %s14, 1
        %s257 = scalar_select %p256, %s14, 1
        %s258 = smul.addr %s257, 3
        %s259 = smul.addr %s258, 4
        %s260 = scalar_lea.vmem %s0, %s259
      $region48: #{dense_block_forward.1} parent=43 // pred_fallthru
        _
    $region44: #{dense_block_forward.1} parent=5 // pred_fallthru
      _
    %p261 = scmp.le.s32.totalorder 1, %s14
    %p262 = scmp.lt.s32.totalorder %s14, 3
    %p263 = pnand %p261, %p262
    %p264 = pneg %p263
    // Predicated region
    $region49: #{dense_block_forward.1} parent=5 // pred_check
      _
    $region50: #{dense_block_forward.1} parent=5 // pred_check_branch
      %266 = sbr.rel (%p263) target = $region52
    $region51: #{dense_block_forward.1} parent=5 // pred_region
      %s267 = ssub.s32 %s14, 1
      %p268 = scmp.lt.s32.totalorder %s19, 1
      %s269 = scalar_select %p268, %s19, 1
      %s270 = smul.addr %s269, 3
      %s271 = smul.addr %s270, 4
      %s272 = scalar_lea.vmem %s0, %s271
      %p273 = pneg %p40
      %p274 = pneg %p37
      %p275 = pneg %p61
      %p276 = pneg %p58
      %p277 = pneg %p82
      %p278 = pneg %p79
      %p279 = pneg %p103
      %p280 = pneg %p100
      %p281 = pneg %p124
      %p282 = pneg %p121
      %p283 = pneg %p145
      %p284 = pneg %p142
      %p285 = pneg %p166
      %p286 = pneg %p163
      %p287 = pneg %p187
      %p288 = pneg %p184
      %p289 = pneg %p213
      %p290 = pneg %p210
      %p291 = scmp.lt.s32.totalorder %s19, 1
      %s292 = scalar_select %p291, %s19, 1
      %s293 = smul.addr %s292, 21
      %s294 = smul.addr %s293, 8
      %s295 = scalar_lea.vmem %s8, %s294
      %p296 = scmp.lt.s32.totalorder %s19, 1
      %s297 = scalar_select %p296, %s19, 1
      %s298 = smul.addr %s297, 3
      %s299 = smul.addr %s298, 4
      %s300 = scalar_lea.vmem %s0, %s299
      %p301 = scmp.lt.s32.totalorder %s19, 1
      %s302 = scalar_select %p301, %s19, 1
      %s303 = smul.addr %s302, 21
      %s304 = smul.addr %s303, 8
      %s305 = scalar_lea.vmem %s8, %s304
      %v306 = vld [vmem:[%s7] sm:$0x7]
      %307 = vst [vmem:[#allocation2] sm:$0xff] 0.0
      %308 = vst [vmem:[#allocation2 + $0x8] sm:$0xff] 0.0
      %309 = vst [vmem:[#allocation2 + $0x10] sm:$0xff] 0.0
      %310 = vst [vmem:[#allocation2 + $0x18] sm:$0xff] 0.0
      %vm311 = vcmask 556032
      %312 = vst.msk [vmem:[#allocation2 + $0x20] sm:$0xff] %vm311, 0.0
      %313 = vst [vmem:[#allocation2 + $0x28] sm:$0xff] 0.0
      %314 = vst [vmem:[#allocation2 + $0x30] sm:$0xff] 0.0
      %315 = vst [vmem:[#allocation2 + $0x38] sm:$0xff] 0.0
      %316 = vst [vmem:[#allocation2 + $0x40] sm:$0xff] 0.0
      %317 = vst.msk [vmem:[#allocation2 + $0x48] sm:$0xff] %vm311, 0.0
      %v318 = vld [vmem:[%s300] sm:$0xff]
      %v319 = vld [vmem:[%s300 + $0x8] sm:$0xf]
      %322 = vst [vmem:[#allocation1] ss:$2 sm:$0xff] %v318
      %s323 = scalar_lea.vmem [#allocation1], 16
      %324 = vst [vmem:[%s323] ss:$2 sm:$0xff] %v319
      %v325 = vld.sshfl [vmem:[#allocation1] sm:$0xff pattern:$0x75316420]
      %v326 = vld.sshfl [vmem:[#allocation1 + $0x8] sm:$0xff pattern:$0x75316420]
      %v327 = vld.sshfl [vmem:[#allocation1 + $0x10] sm:$0xff pattern:$0x75316420]
      %331 = vst [vmem:[%s305] sm:$0xf] %v325
      %332 = vst [vmem:[%s305 + $0x8] sm:$0xf] %v326
      %vm333 = vcmask 551936
      %334 = vst.msk [vmem:[%s305 + $0x10] sm:$0xf] %vm333, %v327
      %335 = vst [vmem:[#allocation1] ss:$2 sm:$0xff] %v318
      %s336 = scalar_lea.vmem [#allocation1], 16
      %337 = vst [vmem:[%s336] ss:$2 sm:$0xff] %v319
      %v338 = vld.sshfl [vmem:[#allocation1] sm:$0xff pattern:$0x75316420]
      %v339 = vld.sshfl [vmem:[#allocation1 + $0x8] sm:$0xff pattern:$0x75316420]
      %v340 = vld.sshfl [vmem:[#allocation1 + $0x10] sm:$0xff pattern:$0x75316420]
      %344 = vst [vmem:[#allocation2 + $0x8] sm:$0xf] %v338
      %345 = vst [vmem:[#allocation2 + $0x10] sm:$0xf] %v339
      %346 = vst.msk [vmem:[#allocation2 + $0x18] sm:$0xf] %vm333, %v340
      %v347 = vld [vmem:[#allocation2] sm:$0xf]
      %v348 = vld [vmem:[#allocation2 + $0x8] sm:$0xf]
      %v349 = vld [vmem:[#allocation2 + $0x10] sm:$0xf]
      %v350 = vld [vmem:[#allocation2 + $0x18] sm:$0xf]
      %355 = vrot.lane.b32.xlu0 %v347, 19
      %v356 = vpop.permute.xlu0 %355
      %357 = vrot.lane.b32.xlu0 %v348, 19
      %v358 = vpop.permute.xlu0 %357
      %359 = vrot.lane.b32.xlu0 %v349, 19
      %v360 = vpop.permute.xlu0 %359
      %361 = vrot.lane.b32.xlu0 %v350, 19
      %v362 = vpop.permute.xlu0 %361
      %vm363 = vcmask 154624
      %v364 = vsel %vm363, %v356, %v358
      %v365 = vsel %vm363, %v358, %v360
      %v366 = vsel %vm363, %v360, %v362
      %370 = vst [vmem:[#allocation3] sm:$0xf] %v364
      %371 = vst [vmem:[#allocation3 + $0x8] sm:$0xf] %v365
      %372 = vst.msk [vmem:[#allocation3 + $0x10] sm:$0xf] %vm333, %v366
      %v373 = vld [vmem:[#allocation2] sm:$0xf]
      %v374 = vld [vmem:[#allocation2 + $0x8] sm:$0xf]
      %v375 = vld [vmem:[#allocation2 + $0x10] sm:$0xf]
      %v376 = vld [vmem:[#allocation2 + $0x18] sm:$0xf]
      %v381 = vrot.slane %v373, 4
      %v382 = vrot.slane %v374, 4
      %v383 = vrot.slane %v375, 4
      %v384 = vrot.slane %v376, 4
      %385 = vrot.lane.b32.xlu0 %v381, 18
      %v386 = vpop.permute.xlu0 %385
      %387 = vrot.lane.b32.xlu0 %v382, 18
      %v388 = vpop.permute.xlu0 %387
      %389 = vrot.lane.b32.xlu0 %v383, 18
      %v390 = vpop.permute.xlu0 %389
      %391 = vrot.lane.b32.xlu0 %v384, 18
      %v392 = vpop.permute.xlu0 %391
      %vm393 = vcmask 146432
      %v394 = vsel %vm393, %v386, %v388
      %v395 = vsel %vm393, %v388, %v390
      %v396 = vsel %vm393, %v390, %v392
      %400 = vst [vmem:[#allocation3] sm:$0xf0] %v394
      %401 = vst [vmem:[#allocation3 + $0x8] sm:$0xf0] %v395
      %vm402 = vcmask 556036
      %403 = vst.msk [vmem:[#allocation3 + $0x10] sm:$0xf0] %vm402, %v396
      %v404 = vld [vmem:[#allocation2] sm:$0xf]
      %v405 = vld [vmem:[#allocation2 + $0x8] sm:$0xf]
      %v406 = vld [vmem:[#allocation2 + $0x10] sm:$0xf]
      %v407 = vld [vmem:[#allocation2 + $0x18] sm:$0xf]
      %412 = vrot.lane.b32.xlu0 %v404, 17
      %v413 = vpop.permute.xlu0 %412
      %414 = vrot.lane.b32.xlu0 %v405, 17
      %v415 = vpop.permute.xlu0 %414
      %416 = vrot.lane.b32.xlu0 %v406, 17
      %v417 = vpop.permute.xlu0 %416
      %418 = vrot.lane.b32.xlu0 %v407, 17
      %v419 = vpop.permute.xlu0 %418
      %vm420 = vcmask 138240
      %v421 = vsel %vm420, %v413, %v415
      %v422 = vsel %vm420, %v415, %v417
      %v423 = vsel %vm420, %v417, %v419
      %427 = vst [vmem:[#allocation3 + $0x18] sm:$0xf] %v421
      %428 = vst [vmem:[#allocation3 + $0x20] sm:$0xf] %v422
      %429 = vst.msk [vmem:[#allocation3 + $0x28] sm:$0xf] %vm333, %v423
      %v430 = vld [vmem:[#allocation2] sm:$0xf]
      %v431 = vld [vmem:[#allocation2 + $0x8] sm:$0xf]
      %v432 = vld [vmem:[#allocation2 + $0x10] sm:$0xf]
      %v433 = vld [vmem:[#allocation2 + $0x18] sm:$0xf]
      %v438 = vrot.slane %v430, 4
      %v439 = vrot.slane %v431, 4
      %v440 = vrot.slane %v432, 4
      %v441 = vrot.slane %v433, 4
      %442 = vrot.lane.b32.xlu0 %v438, 1
      %v443 = vpop.permute.xlu0 %442
      %444 = vrot.lane.b32.xlu0 %v439, 1
      %v445 = vpop.permute.xlu0 %444
      %446 = vrot.lane.b32.xlu0 %v440, 1
      %v447 = vpop.permute.xlu0 %446
      %448 = vrot.lane.b32.xlu0 %v441, 1
      %v449 = vpop.permute.xlu0 %448
      %vm450 = vcmask 7168
      %v451 = vsel %vm450, %v443, %v445
      %v452 = vsel %vm450, %v445, %v447
      %v453 = vsel %vm450, %v447, %v449
      %457 = vst [vmem:[#allocation3 + $0x18] sm:$0xf0] %v451
      %458 = vst [vmem:[#allocation3 + $0x20] sm:$0xf0] %v452
      %459 = vst.msk [vmem:[#allocation3 + $0x28] sm:$0xf0] %vm402, %v453
      %v460 = vld [vmem:[#allocation2 + $0x8] sm:$0xf]
      %v461 = vld [vmem:[#allocation2 + $0x10] sm:$0xf]
      %v462 = vld [vmem:[#allocation2 + $0x18] sm:$0xf]
      %463 = vst [vmem:[#allocation3 + $0x30] sm:$0xf] %v460
      %464 = vst [vmem:[#allocation3 + $0x38] sm:$0xf] %v461
      %465 = vst.msk [vmem:[#allocation3 + $0x40] sm:$0xf] %vm333, %v462
      %v466 = vld [vmem:[#allocation2 + $0x8] sm:$0xf]
      %v467 = vld [vmem:[#allocation2 + $0x10] sm:$0xf]
      %v468 = vld [vmem:[#allocation2 + $0x18] sm:$0xf]
      %v472 = vrot.slane %v466, 4
      %v473 = vrot.slane %v467, 4
      %v474 = vrot.slane %v468, 4
      %475 = vrot.lane.b32.xlu0 %v472, 127
      %v476 = vpop.permute.xlu0 %475
      %477 = vrot.lane.b32.xlu0 %v473, 127
      %v478 = vpop.permute.xlu0 %477
      %479 = vrot.lane.b32.xlu0 %v474, 127
      %v480 = vpop.permute.xlu0 %479
      %vm481 = vcmask 1039360
      %v482 = vsel %vm481, %v476, %v478
      %v483 = vsel %vm481, %v478, %v480
      %487 = vst [vmem:[#allocation3 + $0x30] sm:$0xf0] %v482
      %488 = vst [vmem:[#allocation3 + $0x38] sm:$0xf0] %v483
      %489 = vst.msk [vmem:[#allocation3 + $0x40] sm:$0xf0] %vm402, %v480
      %v490 = vld [vmem:[#allocation2 + $0x8] sm:$0xf]
      %v491 = vld [vmem:[#allocation2 + $0x10] sm:$0xf]
      %v492 = vld [vmem:[#allocation2 + $0x18] sm:$0xf]
      %496 = vrot.lane.b32.xlu0 %v490, 111
      %v497 = vpop.permute.xlu0 %496
      %498 = vrot.lane.b32.xlu0 %v491, 111
      %v499 = vpop.permute.xlu0 %498
      %500 = vrot.lane.b32.xlu0 %v492, 111
      %v501 = vpop.permute.xlu0 %500
      %vm502 = vcmask 908288
      %v503 = vsel %vm502, %v497, %v499
      %v504 = vsel %vm502, %v499, %v501
      %508 = vst [vmem:[#allocation3 + $0x48] sm:$0xf] %v503
      %509 = vst [vmem:[#allocation3 + $0x50] sm:$0xf] %v504
      %510 = vst.msk [vmem:[#allocation3 + $0x58] sm:$0xf] %vm333, %v501
      %v511 = vld [vmem:[#allocation2 + $0x8] sm:$0xf]
      %v512 = vld [vmem:[#allocation2 + $0x10] sm:$0xf]
      %v513 = vld [vmem:[#allocation2 + $0x18] sm:$0xf]
      %v517 = vrot.slane %v511, 4
      %v518 = vrot.slane %v512, 4
      %v519 = vrot.slane %v513, 4
      %520 = vrot.lane.b32.xlu0 %v517, 110
      %v521 = vpop.permute.xlu0 %520
      %522 = vrot.lane.b32.xlu0 %v518, 110
      %v523 = vpop.permute.xlu0 %522
      %524 = vrot.lane.b32.xlu0 %v519, 110
      %v525 = vpop.permute.xlu0 %524
      %vm526 = vcmask 900096
      %v527 = vsel %vm526, %v521, %v523
      %v528 = vsel %vm526, %v523, %v525
      %532 = vst [vmem:[#allocation3 + $0x48] sm:$0xf0] %v527
      %533 = vst [vmem:[#allocation3 + $0x50] sm:$0xf0] %v528
      %534 = vst.msk [vmem:[#allocation3 + $0x58] sm:$0xf0] %vm402, %v525
      %v535 = vld [vmem:[#allocation2 + $0x8] sm:$0xf]
      %v536 = vld [vmem:[#allocation2 + $0x10] sm:$0xf]
      %v537 = vld [vmem:[#allocation2 + $0x18] sm:$0xf]
      %541 = vrot.lane.b32.xlu0 %v535, 109
      %v542 = vpop.permute.xlu0 %541
      %543 = vrot.lane.b32.xlu0 %v536, 109
      %v544 = vpop.permute.xlu0 %543
      %545 = vrot.lane.b32.xlu0 %v537, 109
      %v546 = vpop.permute.xlu0 %545
      %vm547 = vcmask 891904
      %v548 = vsel %vm547, %v542, %v544
      %v549 = vsel %vm547, %v544, %v546
      %553 = vst [vmem:[#allocation3 + $0x60] sm:$0xf] %v548
      %554 = vst [vmem:[#allocation3 + $0x68] sm:$0xf] %v549
      %555 = vst.msk [vmem:[#allocation3 + $0x70] sm:$0xf] %vm333, %v546
      %v556 = vld [vmem:[%s1] sm:$0xff]
      %v557 = vld [vmem:[%s1 + $0x8] sm:$0xff]
      %v558 = vld [vmem:[#allocation3] sm:$0xff]
      %v559 = vld [vmem:[#allocation3 + $0x8] sm:$0xff]
      %v560 = vld [vmem:[#allocation3 + $0x10] sm:$0xff]
      %v561 = vld [vmem:[#allocation3 + $0x18] sm:$0xff]
      %v562 = vld [vmem:[#allocation3 + $0x20] sm:$0xff]
      %v563 = vld [vmem:[#allocation3 + $0x28] sm:$0xff]
      %v564 = vld [vmem:[#allocation3 + $0x30] sm:$0xff]
      %v565 = vld [vmem:[#allocation3 + $0x38] sm:$0xff]
      %v566 = vld [vmem:[#allocation3 + $0x40] sm:$0xff]
      %v567 = vld [vmem:[#allocation3 + $0x48] sm:$0xff]
      %v568 = vld [vmem:[#allocation3 + $0x50] sm:$0xff]
      %v569 = vld [vmem:[#allocation3 + $0x58] sm:$0xff]
      %v570 = vld [vmem:[#allocation3 + $0x60] sm:$0xf]
      %v571 = vld [vmem:[#allocation3 + $0x68] sm:$0xf]
      %v572 = vld [vmem:[#allocation3 + $0x70] sm:$0xf]
      %v573 = vld [vmem:[%s4] sm:$0xff]
      %v574 = vld [vmem:[%s4 + $0x8] sm:$0xff]
      %576 = vset.pattern.permute.xlu0 0
      %577 = vperm.xlu0 %576, %v573
      %v578 = vpop.permute.xlu0 %577
      %581 = vset.pattern.permute.xlu0 0
      %582 = vperm.xlu0 %581, %v574
      %v583 = vpop.permute.xlu0 %582
      %vm585 = vcmask 293888
      %v587 = vsel %vm585, %v556, 0
      %v590 = vsel %vm585, %v557, 0
      %vm592 = vcmask 1043456
      %v594 = vsel %vm592, %v570, 0
      %v597 = vsel %vm592, %v571, 0
      %v600 = vsel %vm592, %v572, 0
      %602 = vmatpush.msra.mxu0 0.0
      %603 = vmatpush.msra.mxu0 0.0
      %604 = vmatpush.msra.mxu0 0.0
      %605 = vmatpush.msra.mxu0 0.0
      %606 = vmatpush.msra.mxu0 0.0
      %607 = vmatpush.msra.mxu0 0.0
      %608 = vmatpush.msra.mxu0 0.0
      %609 = vmatpush.msra.mxu0 0.0
      %610 = vmatpush.msra.mxu0 0.0
      %611 = vmatpush.msra.mxu0 0.0
      %612 = vmatpush.msra.mxu0 0.0
      %613 = vmatpush.msra.mxu0 %v594
      %614 = vmatpush.msra.mxu0 %v567
      %615 = vmatpush.msra.mxu0 %v564
      %616 = vmatpush.msra.mxu0 %v561
      %617 = vmatpush.msra.mxu0 %v558
      %618 = vmatmul.f32.gmra.mxu0 %v587
      %v619 = vpop.f32.mrf.mxu0
      %v620 = vadd.f32 %v578, %v619
      %621 = vmatmul.f32.gmra.mxu0 %v590
      %v622 = vpop.f32.mrf.mxu0
      %v623 = vadd.f32 %v583, %v622
      %624 = vdwg.mxu0
      %625 = vmatpush.msra.mxu0 0.0
      %626 = vmatpush.msra.mxu0 0.0
      %627 = vmatpush.msra.mxu0 0.0
      %628 = vmatpush.msra.mxu0 0.0
      %629 = vmatpush.msra.mxu0 0.0
      %630 = vmatpush.msra.mxu0 0.0
      %631 = vmatpush.msra.mxu0 0.0
      %632 = vmatpush.msra.mxu0 0.0
      %633 = vmatpush.msra.mxu0 0.0
      %634 = vmatpush.msra.mxu0 0.0
      %635 = vmatpush.msra.mxu0 0.0
      %636 = vmatpush.msra.mxu0 %v597
      %637 = vmatpush.msra.mxu0 %v568
      %638 = vmatpush.msra.mxu0 %v565
      %639 = vmatpush.msra.mxu0 %v562
      %640 = vmatpush.msra.mxu0 %v559
      %641 = vmatmul.f32.gmra.mxu0 %v587
      %v642 = vpop.f32.mrf.mxu0
      %v643 = vadd.f32 %v578, %v642
      %644 = vmatmul.f32.gmra.mxu0 %v590
      %v645 = vpop.f32.mrf.mxu0
      %v646 = vadd.f32 %v583, %v645
      %647 = vdwg.mxu0
      %648 = vmatpush.msra.mxu0 0.0
      %649 = vmatpush.msra.mxu0 0.0
      %650 = vmatpush.msra.mxu0 0.0
      %651 = vmatpush.msra.mxu0 0.0
      %652 = vmatpush.msra.mxu0 0.0
      %653 = vmatpush.msra.mxu0 0.0
      %654 = vmatpush.msra.mxu0 0.0
      %655 = vmatpush.msra.mxu0 0.0
      %656 = vmatpush.msra.mxu0 0.0
      %657 = vmatpush.msra.mxu0 0.0
      %658 = vmatpush.msra.mxu0 0.0
      %659 = vmatpush.msra.mxu0 %v600
      %660 = vmatpush.msra.mxu0 %v569
      %661 = vmatpush.msra.mxu0 %v566
      %662 = vmatpush.msra.mxu0 %v563
      %663 = vmatpush.msra.mxu0 %v560
      %664 = vmatmul.f32.gmra.mxu0 %v587
      %v665 = vpop.f32.mrf.mxu0
      %v666 = vadd.f32 %v578, %v665
      %667 = vmatmul.f32.gmra.mxu0 %v590
      %v668 = vpop.f32.mrf.mxu0
      %v669 = vadd.f32 %v583, %v668
      %670 = vdwg.mxu0
      %vm671 = vcmp.gt.f32.partialorder %v620, 0.0
      %vm672 = vcmp.gt.f32.partialorder %v643, 0.0
      %vm673 = vcmp.gt.f32.partialorder %v666, 0.0
      %vm674 = vcmp.gt.f32.partialorder %v623, 0.0
      %vm675 = vcmp.gt.f32.partialorder %v646, 0.0
      %vm676 = vcmp.gt.f32.partialorder %v669, 0.0
      %v677 = vmul.f32 %v620, 0.01
      %v678 = vmul.f32 %v643, 0.01
      %v679 = vmul.f32 %v666, 0.01
      %v680 = vmul.f32 %v623, 0.01
      %v681 = vmul.f32 %v646, 0.01
      %v682 = vmul.f32 %v669, 0.01
      %v683 = vsel %vm671, %v620, %v677
      %v684 = vsel %vm672, %v643, %v678
      %v685 = vsel %vm673, %v666, %v679
      %v686 = vsel %vm674, %v623, %v680
      %v687 = vsel %vm675, %v646, %v681
      %v688 = vsel %vm676, %v669, %v682
      %v690 = vperm.slane %v306, 0
      %v691 = vperm.slane %v306, 1
      %v692 = vperm.slane %v306, 2
      %v696 = vmul.f32 %v683, %v690
      %v697 = vmul.f32 %v684, %v691
      %v698 = vmul.f32 %v685, %v692
      %v699 = vmul.f32 %v686, %v690
      %v700 = vmul.f32 %v687, %v691
      %v701 = vmul.f32 %v688, %v692
      %v708 = vrot.slane %v696, 4
      %v709 = vrot.slane %v697, 4
      %v710 = vrot.slane %v698, 4
      %v711 = vrot.slane %v699, 4
      %v712 = vsel %vm592, %v708, %v711
      %v713 = vrot.slane %v700, 4
      %v714 = vsel %vm592, %v709, %v713
      %v715 = vrot.slane %v701, 4
      %v716 = vsel %vm592, %v710, %v715
      %726 = vst [vmem:[%s305] sm:$0xf0] %v708
      %727 = vst [vmem:[%s305 + $0x8] sm:$0xf0] %v709
      %728 = vst.msk [vmem:[%s305 + $0x10] sm:$0xf0] %vm402, %v710
      %729 = vst [vmem:[%s305 + $0x18] sm:$0xff] %v712
      %730 = vst [vmem:[%s305 + $0x20] sm:$0xff] %v714
      %731 = vst.msk [vmem:[%s305 + $0x28] sm:$0xff] %vm311, %v716
      %732 = vst [vmem:[%s305 + $0x30] sm:$0xf] %v711
      %733 = vst [vmem:[%s305 + $0x38] sm:$0xf] %v713
      %734 = vst.msk [vmem:[%s305 + $0x40] sm:$0xf] %vm333, %v715
      %735 = vst [vmem:[#allocation2 + $0x8] sm:$0xff] %v696
      %736 = vst [vmem:[#allocation2 + $0x10] sm:$0xff] %v697
      %737 = vst.msk [vmem:[#allocation2 + $0x18] sm:$0xff] %vm311, %v698
      %738 = vst [vmem:[#allocation2 + $0x30] sm:$0xff] %v699
      %739 = vst [vmem:[#allocation2 + $0x38] sm:$0xff] %v700
      %740 = vst.msk [vmem:[#allocation2 + $0x40] sm:$0xff] %vm311, %v701
      %v741 = vld [vmem:[#allocation2] sm:$0xff]
      %v742 = vld [vmem:[#allocation2 + $0x8] sm:$0xff]
      %v743 = vld [vmem:[#allocation2 + $0x10] sm:$0xff]
      %v744 = vld [vmem:[#allocation2 + $0x18] sm:$0xff]
      %v745 = vld [vmem:[#allocation2 + $0x28] sm:$0xff]
      %v746 = vld [vmem:[#allocation2 + $0x30] sm:$0xff]
      %v747 = vld [vmem:[#allocation2 + $0x38] sm:$0xff]
      %v748 = vld [vmem:[#allocation2 + $0x40] sm:$0xff]
      %v757 = vrot.slane %v741, 4
      %v758 = vrot.slane %v742, 4
      %v759 = vrot.slane %v743, 4
      %v760 = vrot.slane %v744, 4
      %v761 = vrot.slane %v745, 4
      %v762 = vsel %vm592, %v757, %v761
      %v763 = vrot.slane %v746, 4
      %v764 = vsel %vm592, %v758, %v763
      %v765 = vrot.slane %v747, 4
      %v766 = vsel %vm592, %v759, %v765
      %v767 = vrot.slane %v748, 4
      %v768 = vsel %vm592, %v760, %v767
      %769 = vrot.lane.b32.xlu0 %v757, 19
      %v770 = vpop.permute.xlu0 %769
      %771 = vrot.lane.b32.xlu0 %v758, 19
      %v772 = vpop.permute.xlu0 %771
      %773 = vrot.lane.b32.xlu0 %v759, 19
      %v774 = vpop.permute.xlu0 %773
      %775 = vrot.lane.b32.xlu0 %v760, 19
      %v776 = vpop.permute.xlu0 %775
      %777 = vrot.lane.b32.xlu0 %v762, 19
      %v778 = vpop.permute.xlu0 %777
      %779 = vrot.lane.b32.xlu0 %v764, 19
      %v780 = vpop.permute.xlu0 %779
      %781 = vrot.lane.b32.xlu0 %v766, 19
      %v782 = vpop.permute.xlu0 %781
      %783 = vrot.lane.b32.xlu0 %v768, 19
      %v784 = vpop.permute.xlu0 %783
      %785 = vrot.lane.b32.xlu0 %v761, 19
      %v786 = vpop.permute.xlu0 %785
      %787 = vrot.lane.b32.xlu0 %v763, 19
      %v788 = vpop.permute.xlu0 %787
      %789 = vrot.lane.b32.xlu0 %v765, 19
      %v790 = vpop.permute.xlu0 %789
      %791 = vrot.lane.b32.xlu0 %v767, 19
      %v792 = vpop.permute.xlu0 %791
      %v793 = vsel %vm363, %v770, %v772
      %v794 = vsel %vm363, %v772, %v774
      %v795 = vsel %vm363, %v774, %v776
      %v796 = vsel %vm363, %v778, %v780
      %v797 = vsel %vm363, %v780, %v782
      %v798 = vsel %vm363, %v782, %v784
      %v799 = vsel %vm363, %v786, %v788
      %v800 = vsel %vm363, %v788, %v790
      %v801 = vsel %vm363, %v790, %v792
      %811 = vst [vmem:[#allocation3 + $0x60] sm:$0xf0] %v793
      %812 = vst [vmem:[#allocation3 + $0x68] sm:$0xf0] %v794
      %813 = vst.msk [vmem:[#allocation3 + $0x70] sm:$0xf0] %vm402, %v795
      %814 = vst [vmem:[#allocation3 + $0x78] sm:$0xff] %v796
      %815 = vst [vmem:[#allocation3 + $0x80] sm:$0xff] %v797
      %816 = vst.msk [vmem:[#allocation3 + $0x88] sm:$0xff] %vm311, %v798
      %817 = vst [vmem:[#allocation3 + $0x90] sm:$0xf] %v799
      %818 = vst [vmem:[#allocation3 + $0x98] sm:$0xf] %v800
      %819 = vst.msk [vmem:[#allocation3 + $0xa0] sm:$0xf] %vm333, %v801
      %v820 = vld [vmem:[#allocation2] sm:$0xff]
      %v821 = vld [vmem:[#allocation2 + $0x8] sm:$0xff]
      %v822 = vld [vmem:[#allocation2 + $0x10] sm:$0xff]
      %v823 = vld [vmem:[#allocation2 + $0x18] sm:$0xff]
      %v824 = vld [vmem:[#allocation2 + $0x28] sm:$0xff]
      %v825 = vld [vmem:[#allocation2 + $0x30] sm:$0xff]
      %v826 = vld [vmem:[#allocation2 + $0x38] sm:$0xff]
      %v827 = vld [vmem:[#allocation2 + $0x40] sm:$0xff]
      %v836 = vrot.slane %v820, 4
      %v837 = vrot.slane %v821, 4
      %v838 = vrot.slane %v822, 4
      %v839 = vrot.slane %v823, 4
      %v840 = vrot.slane %v824, 4
      %v841 = vsel %vm592, %v836, %v840
      %v842 = vrot.slane %v825, 4
      %v843 = vsel %vm592, %v837, %v842
      %v844 = vrot.slane %v826, 4
      %v845 = vsel %vm592, %v838, %v844
      %v846 = vrot.slane %v827, 4
      %v847 = vsel %vm592, %v839, %v846
      %848 = vrot.lane.b32.xlu0 %v836, 18
      %v849 = vpop.permute.xlu0 %848
      %850 = vrot.lane.b32.xlu0 %v837, 18
      %v851 = vpop.permute.xlu0 %850
      %852 = vrot.lane.b32.xlu0 %v838, 18
      %v853 = vpop.permute.xlu0 %852
      %854 = vrot.lane.b32.xlu0 %v839, 18
      %v855 = vpop.permute.xlu0 %854
      %856 = vrot.lane.b32.xlu0 %v841, 18
      %v857 = vpop.permute.xlu0 %856
      %858 = vrot.lane.b32.xlu0 %v843, 18
      %v859 = vpop.permute.xlu0 %858
      %860 = vrot.lane.b32.xlu0 %v845, 18
      %v861 = vpop.permute.xlu0 %860
      %862 = vrot.lane.b32.xlu0 %v847, 18
      %v863 = vpop.permute.xlu0 %862
      %864 = vrot.lane.b32.xlu0 %v840, 18
      %v865 = vpop.permute.xlu0 %864
      %866 = vrot.lane.b32.xlu0 %v842, 18
      %v867 = vpop.permute.xlu0 %866
      %868 = vrot.lane.b32.xlu0 %v844, 18
      %v869 = vpop.permute.xlu0 %868
      %870 = vrot.lane.b32.xlu0 %v846, 18
      %v871 = vpop.permute.xlu0 %870
      %v872 = vsel %vm393, %v849, %v851
      %v873 = vsel %vm393, %v851, %v853
      %v874 = vsel %vm393, %v853, %v855
      %v875 = vsel %vm393, %v857, %v859
      %v876 = vsel %vm393, %v859, %v861
      %v877 = vsel %vm393, %v861, %v863
      %v878 = vsel %vm393, %v865, %v867
      %v879 = vsel %vm393, %v867, %v869
      %v880 = vsel %vm393, %v869, %v871
      %890 = vst [vmem:[#allocation3 + $0x90] sm:$0xf0] %v872
      %891 = vst [vmem:[#allocation3 + $0x98] sm:$0xf0] %v873
      %892 = vst.msk [vmem:[#allocation3 + $0xa0] sm:$0xf0] %vm402, %v874
      %893 = vst [vmem:[#allocation3 + $0xa8] sm:$0xff] %v875
      %894 = vst [vmem:[#allocation3 + $0xb0] sm:$0xff] %v876
      %895 = vst.msk [vmem:[#allocation3 + $0xb8] sm:$0xff] %vm311, %v877
      %896 = vst [vmem:[#allocation3 + $0xc0] sm:$0xf] %v878
      %897 = vst [vmem:[#allocation3 + $0xc8] sm:$0xf] %v879
      %898 = vst.msk [vmem:[#allocation3 + $0xd0] sm:$0xf] %vm333, %v880
      %v899 = vld [vmem:[#allocation2] sm:$0xff]
      %v900 = vld [vmem:[#allocation2 + $0x8] sm:$0xff]
      %v901 = vld [vmem:[#allocation2 + $0x10] sm:$0xff]
      %v902 = vld [vmem:[#allocation2 + $0x18] sm:$0xff]
      %v903 = vld [vmem:[#allocation2 + $0x28] sm:$0xff]
      %v904 = vld [vmem:[#allocation2 + $0x30] sm:$0xff]
      %v905 = vld [vmem:[#allocation2 + $0x38] sm:$0xff]
      %v906 = vld [vmem:[#allocation2 + $0x40] sm:$0xff]
      %v915 = vrot.slane %v899, 4
      %v916 = vrot.slane %v900, 4
      %v917 = vrot.slane %v901, 4
      %v918 = vrot.slane %v902, 4
      %v919 = vrot.slane %v903, 4
      %v920 = vsel %vm592, %v915, %v919
      %v921 = vrot.slane %v904, 4
      %v922 = vsel %vm592, %v916, %v921
      %v923 = vrot.slane %v905, 4
      %v924 = vsel %vm592, %v917, %v923
      %v925 = vrot.slane %v906, 4
      %v926 = vsel %vm592, %v918, %v925
      %927 = vrot.lane.b32.xlu0 %v915, 17
      %v928 = vpop.permute.xlu0 %927
      %929 = vrot.lane.b32.xlu0 %v916, 17
      %v930 = vpop.permute.xlu0 %929
      %931 = vrot.lane.b32.xlu0 %v917, 17
      %v932 = vpop.permute.xlu0 %931
      %933 = vrot.lane.b32.xlu0 %v918, 17
      %v934 = vpop.permute.xlu0 %933
      %935 = vrot.lane.b32.xlu0 %v920, 17
      %v936 = vpop.permute.xlu0 %935
      %937 = vrot.lane.b32.xlu0 %v922, 17
      %v938 = vpop.permute.xlu0 %937
      %939 = vrot.lane.b32.xlu0 %v924, 17
      %v940 = vpop.permute.xlu0 %939
      %941 = vrot.lane.b32.xlu0 %v926, 17
      %v942 = vpop.permute.xlu0 %941
      %943 = vrot.lane.b32.xlu0 %v919, 17
      %v944 = vpop.permute.xlu0 %943
      %945 = vrot.lane.b32.xlu0 %v921, 17
      %v946 = vpop.permute.xlu0 %945
      %947 = vrot.lane.b32.xlu0 %v923, 17
      %v948 = vpop.permute.xlu0 %947
      %949 = vrot.lane.b32.xlu0 %v925, 17
      %v950 = vpop.permute.xlu0 %949
      %v951 = vsel %vm420, %v928, %v930
      %v952 = vsel %vm420, %v930, %v932
      %v953 = vsel %vm420, %v932, %v934
      %v954 = vsel %vm420, %v936, %v938
      %v955 = vsel %vm420, %v938, %v940
      %v956 = vsel %vm420, %v940, %v942
      %v957 = vsel %vm420, %v944, %v946
      %v958 = vsel %vm420, %v946, %v948
      %v959 = vsel %vm420, %v948, %v950
      %969 = vst [vmem:[#allocation3 + $0xc0] sm:$0xf0] %v951
      %970 = vst [vmem:[#allocation3 + $0xc8] sm:$0xf0] %v952
      %971 = vst.msk [vmem:[#allocation3 + $0xd0] sm:$0xf0] %vm402, %v953
      %972 = vst [vmem:[#allocation3 + $0xd8] sm:$0xff] %v954
      %973 = vst [vmem:[#allocation3 + $0xe0] sm:$0xff] %v955
      %974 = vst.msk [vmem:[#allocation3 + $0xe8] sm:$0xff] %vm311, %v956
      %975 = vst [vmem:[#allocation3 + $0xf0] sm:$0xf] %v957
      %976 = vst [vmem:[#allocation3 + $0xf8] sm:$0xf] %v958
      %977 = vst.msk [vmem:[#allocation3 + $0x100] sm:$0xf] %vm333, %v959
      %v978 = vld [vmem:[#allocation2] sm:$0xff]
      %v979 = vld [vmem:[#allocation2 + $0x8] sm:$0xff]
      %v980 = vld [vmem:[#allocation2 + $0x10] sm:$0xff]
      %v981 = vld [vmem:[#allocation2 + $0x18] sm:$0xff]
      %v982 = vld [vmem:[#allocation2 + $0x28] sm:$0xff]
      %v983 = vld [vmem:[#allocation2 + $0x30] sm:$0xff]
      %v984 = vld [vmem:[#allocation2 + $0x38] sm:$0xff]
      %v985 = vld [vmem:[#allocation2 + $0x40] sm:$0xff]
      %v994 = vrot.slane %v978, 4
      %v995 = vrot.slane %v979, 4
      %v996 = vrot.slane %v980, 4
      %v997 = vrot.slane %v981, 4
      %v998 = vrot.slane %v982, 4
      %v999 = vsel %vm592, %v994, %v998
      %v1000 = vrot.slane %v983, 4
      %v1001 = vsel %vm592, %v995, %v1000
      %v1002 = vrot.slane %v984, 4
      %v1003 = vsel %vm592, %v996, %v1002
      %v1004 = vrot.slane %v985, 4
      %v1005 = vsel %vm592, %v997, %v1004
      %1006 = vrot.lane.b32.xlu0 %v994, 1
      %v1007 = vpop.permute.xlu0 %1006
      %1008 = vrot.lane.b32.xlu0 %v995, 1
      %v1009 = vpop.permute.xlu0 %1008
      %1010 = vrot.lane.b32.xlu0 %v996, 1
      %v1011 = vpop.permute.xlu0 %1010
      %1012 = vrot.lane.b32.xlu0 %v997, 1
      %v1013 = vpop.permute.xlu0 %1012
      %1014 = vrot.lane.b32.xlu0 %v999, 1
      %v1015 = vpop.permute.xlu0 %1014
      %1016 = vrot.lane.b32.xlu0 %v1001, 1
      %v1017 = vpop.permute.xlu0 %1016
      %1018 = vrot.lane.b32.xlu0 %v1003, 1
      %v1019 = vpop.permute.xlu0 %1018
      %1020 = vrot.lane.b32.xlu0 %v1005, 1
      %v1021 = vpop.permute.xlu0 %1020
      %1022 = vrot.lane.b32.xlu0 %v998, 1
      %v1023 = vpop.permute.xlu0 %1022
      %1024 = vrot.lane.b32.xlu0 %v1000, 1
      %v1025 = vpop.permute.xlu0 %1024
      %1026 = vrot.lane.b32.xlu0 %v1002, 1
      %v1027 = vpop.permute.xlu0 %1026
      %1028 = vrot.lane.b32.xlu0 %v1004, 1
      %v1029 = vpop.permute.xlu0 %1028
      %v1030 = vsel %vm450, %v1007, %v1009
      %v1031 = vsel %vm450, %v1009, %v1011
      %v1032 = vsel %vm450, %v1011, %v1013
      %v1033 = vsel %vm450, %v1015, %v1017
      %v1034 = vsel %vm450, %v1017, %v1019
      %v1035 = vsel %vm450, %v1019, %v1021
      %v1036 = vsel %vm450, %v1023, %v1025
      %v1037 = vsel %vm450, %v1025, %v1027
      %v1038 = vsel %vm450, %v1027, %v1029
      %1048 = vst [vmem:[#allocation3 + $0xf0] sm:$0xf0] %v1030
      %1049 = vst [vmem:[#allocation3 + $0xf8] sm:$0xf0] %v1031
      %1050 = vst.msk [vmem:[#allocation3 + $0x100] sm:$0xf0] %vm402, %v1032
      %1051 = vst [vmem:[#allocation3 + $0x108] sm:$0xff] %v1033
      %1052 = vst [vmem:[#allocation3 + $0x110] sm:$0xff] %v1034
      %1053 = vst.msk [vmem:[#allocation3 + $0x118] sm:$0xff] %vm311, %v1035
      %1054 = vst [vmem:[#allocation3 + $0x120] sm:$0xf] %v1036
      %1055 = vst [vmem:[#allocation3 + $0x128] sm:$0xf] %v1037
      %1056 = vst.msk [vmem:[#allocation3 + $0x130] sm:$0xf] %vm333, %v1038
      %v1057 = vld [vmem:[#allocation2 + $0x8] sm:$0xff]
      %v1058 = vld [vmem:[#allocation2 + $0x10] sm:$0xff]
      %v1059 = vld [vmem:[#allocation2 + $0x18] sm:$0xff]
      %v1060 = vld [vmem:[#allocation2 + $0x30] sm:$0xff]
      %v1061 = vld [vmem:[#allocation2 + $0x38] sm:$0xff]
      %v1062 = vld [vmem:[#allocation2 + $0x40] sm:$0xff]
      %v1069 = vrot.slane %v1057, 4
      %v1070 = vrot.slane %v1058, 4
      %v1071 = vrot.slane %v1059, 4
      %v1072 = vrot.slane %v1060, 4
      %v1073 = vsel %vm592, %v1069, %v1072
      %v1074 = vrot.slane %v1061, 4
      %v1075 = vsel %vm592, %v1070, %v1074
      %v1076 = vrot.slane %v1062, 4
      %v1077 = vsel %vm592, %v1071, %v1076
      %1087 = vst [vmem:[#allocation3 + $0x120] sm:$0xf0] %v1069
      %1088 = vst [vmem:[#allocation3 + $0x128] sm:$0xf0] %v1070
      %1089 = vst.msk [vmem:[#allocation3 + $0x130] sm:$0xf0] %vm402, %v1071
      %1090 = vst [vmem:[#allocation3 + $0x138] sm:$0xff] %v1073
      %1091 = vst [vmem:[#allocation3 + $0x140] sm:$0xff] %v1075
      %1092 = vst.msk [vmem:[#allocation3 + $0x148] sm:$0xff] %vm311, %v1077
      %1093 = vst [vmem:[#allocation3 + $0x150] sm:$0xf] %v1072
      %1094 = vst [vmem:[#allocation3 + $0x158] sm:$0xf] %v1074
      %1095 = vst.msk [vmem:[#allocation3 + $0x160] sm:$0xf] %vm333, %v1076
      %v1096 = vld [vmem:[#allocation2 + $0x8] sm:$0xff]
      %v1097 = vld [vmem:[#allocation2 + $0x10] sm:$0xff]
      %v1098 = vld [vmem:[#allocation2 + $0x18] sm:$0xff]
      %v1099 = vld [vmem:[#allocation2 + $0x30] sm:$0xff]
      %v1100 = vld [vmem:[#allocation2 + $0x38] sm:$0xff]
      %v1101 = vld [vmem:[#allocation2 + $0x40] sm:$0xff]
      %v1108 = vrot.slane %v1096, 4
      %v1109 = vrot.slane %v1097, 4
      %v1110 = vrot.slane %v1098, 4
      %v1111 = vrot.slane %v1099, 4
      %v1112 = vsel %vm592, %v1108, %v1111
      %v1113 = vrot.slane %v1100, 4
      %v1114 = vsel %vm592, %v1109, %v1113
      %v1115 = vrot.slane %v1101, 4
      %v1116 = vsel %vm592, %v1110, %v1115
      %1117 = vrot.lane.b32.xlu0 %v1108, 127
      %v1118 = vpop.permute.xlu0 %1117
      %1119 = vrot.lane.b32.xlu0 %v1109, 127
      %v1120 = vpop.permute.xlu0 %1119
      %1121 = vrot.lane.b32.xlu0 %v1110, 127
      %v1122 = vpop.permute.xlu0 %1121
      %1123 = vrot.lane.b32.xlu0 %v1112, 127
      %v1124 = vpop.permute.xlu0 %1123
      %1125 = vrot.lane.b32.xlu0 %v1114, 127
      %v1126 = vpop.permute.xlu0 %1125
      %1127 = vrot.lane.b32.xlu0 %v1116, 127
      %v1128 = vpop.permute.xlu0 %1127
      %1129 = vrot.lane.b32.xlu0 %v1111, 127
      %v1130 = vpop.permute.xlu0 %1129
      %1131 = vrot.lane.b32.xlu0 %v1113, 127
      %v1132 = vpop.permute.xlu0 %1131
      %1133 = vrot.lane.b32.xlu0 %v1115, 127
      %v1134 = vpop.permute.xlu0 %1133
      %v1135 = vsel %vm481, %v1118, %v1120
      %v1136 = vsel %vm481, %v1120, %v1122
      %v1137 = vsel %vm481, %v1124, %v1126
      %v1138 = vsel %vm481, %v1126, %v1128
      %v1139 = vsel %vm481, %v1130, %v1132
      %v1140 = vsel %vm481, %v1132, %v1134
      %1150 = vst [vmem:[#allocation3 + $0x150] sm:$0xf0] %v1135
      %1151 = vst [vmem:[#allocation3 + $0x158] sm:$0xf0] %v1136
      %1152 = vst.msk [vmem:[#allocation3 + $0x160] sm:$0xf0] %vm402, %v1122
      %1153 = vst [vmem:[#allocation3 + $0x168] sm:$0xff] %v1137
      %1154 = vst [vmem:[#allocation3 + $0x170] sm:$0xff] %v1138
      %1155 = vst.msk [vmem:[#allocation3 + $0x178] sm:$0xff] %vm311, %v1128
      %1156 = vst [vmem:[#allocation3 + $0x180] sm:$0xf] %v1139
      %1157 = vst [vmem:[#allocation3 + $0x188] sm:$0xf] %v1140
      %1158 = vst.msk [vmem:[#allocation3 + $0x190] sm:$0xf] %vm333, %v1134
      %v1159 = vld [vmem:[#allocation2 + $0x8] sm:$0xff]
      %v1160 = vld [vmem:[#allocation2 + $0x10] sm:$0xff]
      %v1161 = vld [vmem:[#allocation2 + $0x18] sm:$0xff]
      %v1162 = vld [vmem:[#allocation2 + $0x30] sm:$0xff]
      %v1163 = vld [vmem:[#allocation2 + $0x38] sm:$0xff]
      %v1164 = vld [vmem:[#allocation2 + $0x40] sm:$0xff]
      %v1171 = vrot.slane %v1159, 4
      %v1172 = vrot.slane %v1160, 4
      %v1173 = vrot.slane %v1161, 4
      %v1174 = vrot.slane %v1162, 4
      %v1175 = vsel %vm592, %v1171, %v1174
      %v1176 = vrot.slane %v1163, 4
      %v1177 = vsel %vm592, %v1172, %v1176
      %v1178 = vrot.slane %v1164, 4
      %v1179 = vsel %vm592, %v1173, %v1178
      %1180 = vrot.lane.b32.xlu0 %v1171, 111
      %v1181 = vpop.permute.xlu0 %1180
      %1182 = vrot.lane.b32.xlu0 %v1172, 111
      %v1183 = vpop.permute.xlu0 %1182
      %1184 = vrot.lane.b32.xlu0 %v1173, 111
      %v1185 = vpop.permute.xlu0 %1184
      %1186 = vrot.lane.b32.xlu0 %v1175, 111
      %v1187 = vpop.permute.xlu0 %1186
      %1188 = vrot.lane.b32.xlu0 %v1177, 111
      %v1189 = vpop.permute.xlu0 %1188
      %1190 = vrot.lane.b32.xlu0 %v1179, 111
      %v1191 = vpop.permute.xlu0 %1190
      %1192 = vrot.lane.b32.xlu0 %v1174, 111
      %v1193 = vpop.permute.xlu0 %1192
      %1194 = vrot.lane.b32.xlu0 %v1176, 111
      %v1195 = vpop.permute.xlu0 %1194
      %1196 = vrot.lane.b32.xlu0 %v1178, 111
      %v1197 = vpop.permute.xlu0 %1196
      %v1198 = vsel %vm502, %v1181, %v1183
      %v1199 = vsel %vm502, %v1183, %v1185
      %v1200 = vsel %vm502, %v1187, %v1189
      %v1201 = vsel %vm502, %v1189, %v1191
      %v1202 = vsel %vm502, %v1193, %v1195
      %v1203 = vsel %vm502, %v1195, %v1197
      %1213 = vst [vmem:[#allocation3 + $0x180] sm:$0xf0] %v1198
      %1214 = vst [vmem:[#allocation3 + $0x188] sm:$0xf0] %v1199
      %1215 = vst.msk [vmem:[#allocation3 + $0x190] sm:$0xf0] %vm402, %v1185
      %1216 = vst [vmem:[#allocation3 + $0x198] sm:$0xff] %v1200
      %1217 = vst [vmem:[#allocation3 + $0x1a0] sm:$0xff] %v1201
      %1218 = vst.msk [vmem:[#allocation3 + $0x1a8] sm:$0xff] %vm311, %v1191
      %1219 = vst [vmem:[#allocation3 + $0x1b0] sm:$0xf] %v1202
      %1220 = vst [vmem:[#allocation3 + $0x1b8] sm:$0xf] %v1203
      %1221 = vst.msk [vmem:[#allocation3 + $0x1c0] sm:$0xf] %vm333, %v1197
      %v1222 = vld [vmem:[#allocation2 + $0x8] sm:$0xff]
      %v1223 = vld [vmem:[#allocation2 + $0x10] sm:$0xff]
      %v1224 = vld [vmem:[#allocation2 + $0x18] sm:$0xff]
      %v1225 = vld [vmem:[#allocation2 + $0x30] sm:$0xff]
      %v1226 = vld [vmem:[#allocation2 + $0x38] sm:$0xff]
      %v1227 = vld [vmem:[#allocation2 + $0x40] sm:$0xff]
      %v1234 = vrot.slane %v1222, 4
      %v1235 = vrot.slane %v1223, 4
      %v1236 = vrot.slane %v1224, 4
      %v1237 = vrot.slane %v1225, 4
      %v1238 = vsel %vm592, %v1234, %v1237
      %v1239 = vrot.slane %v1226, 4
      %v1240 = vsel %vm592, %v1235, %v1239
      %v1241 = vrot.slane %v1227, 4
      %v1242 = vsel %vm592, %v1236, %v1241
      %1243 = vrot.lane.b32.xlu0 %v1234, 110
      %v1244 = vpop.permute.xlu0 %1243
      %1245 = vrot.lane.b32.xlu0 %v1235, 110
      %v1246 = vpop.permute.xlu0 %1245
      %1247 = vrot.lane.b32.xlu0 %v1236, 110
      %v1248 = vpop.permute.xlu0 %1247
      %1249 = vrot.lane.b32.xlu0 %v1238, 110
      %v1250 = vpop.permute.xlu0 %1249
      %1251 = vrot.lane.b32.xlu0 %v1240, 110
      %v1252 = vpop.permute.xlu0 %1251
      %1253 = vrot.lane.b32.xlu0 %v1242, 110
      %v1254 = vpop.permute.xlu0 %1253
      %1255 = vrot.lane.b32.xlu0 %v1237, 110
      %v1256 = vpop.permute.xlu0 %1255
      %1257 = vrot.lane.b32.xlu0 %v1239, 110
      %v1258 = vpop.permute.xlu0 %1257
      %1259 = vrot.lane.b32.xlu0 %v1241, 110
      %v1260 = vpop.permute.xlu0 %1259
      %v1261 = vsel %vm526, %v1244, %v1246
      %v1262 = vsel %vm526, %v1246, %v1248
      %v1263 = vsel %vm526, %v1250, %v1252
      %v1264 = vsel %vm526, %v1252, %v1254
      %v1265 = vsel %vm526, %v1256, %v1258
      %v1266 = vsel %vm526, %v1258, %v1260
      %1276 = vst [vmem:[#allocation3 + $0x1b0] sm:$0xf0] %v1261
      %1277 = vst [vmem:[#allocation3 + $0x1b8] sm:$0xf0] %v1262
      %1278 = vst.msk [vmem:[#allocation3 + $0x1c0] sm:$0xf0] %vm402, %v1248
      %1279 = vst [vmem:[#allocation3 + $0x1c8] sm:$0xff] %v1263
      %1280 = vst [vmem:[#allocation3 + $0x1d0] sm:$0xff] %v1264
      %1281 = vst.msk [vmem:[#allocation3 + $0x1d8] sm:$0xff] %vm311, %v1254
      %1282 = vst [vmem:[#allocation3 + $0x1e0] sm:$0xf] %v1265
      %1283 = vst [vmem:[#allocation3 + $0x1e8] sm:$0xf] %v1266
      %1284 = vst.msk [vmem:[#allocation3 + $0x1f0] sm:$0xf] %vm333, %v1260
      %v1285 = vld [vmem:[#allocation2 + $0x8] sm:$0xff]
      %v1286 = vld [vmem:[#allocation2 + $0x10] sm:$0xff]
      %v1287 = vld [vmem:[#allocation2 + $0x18] sm:$0xff]
      %v1288 = vld [vmem:[#allocation2 + $0x30] sm:$0xff]
      %v1289 = vld [vmem:[#allocation2 + $0x38] sm:$0xff]
      %v1290 = vld [vmem:[#allocation2 + $0x40] sm:$0xff]
      %v1297 = vrot.slane %v1285, 4
      %v1298 = vrot.slane %v1286, 4
      %v1299 = vrot.slane %v1287, 4
      %v1300 = vrot.slane %v1288, 4
      %v1301 = vsel %vm592, %v1297, %v1300
      %v1302 = vrot.slane %v1289, 4
      %v1303 = vsel %vm592, %v1298, %v1302
      %v1304 = vrot.slane %v1290, 4
      %v1305 = vsel %vm592, %v1299, %v1304
      %1306 = vrot.lane.b32.xlu0 %v1297, 109
      %v1307 = vpop.permute.xlu0 %1306
      %1308 = vrot.lane.b32.xlu0 %v1298, 109
      %v1309 = vpop.permute.xlu0 %1308
      %1310 = vrot.lane.b32.xlu0 %v1299, 109
      %v1311 = vpop.permute.xlu0 %1310
      %1312 = vrot.lane.b32.xlu0 %v1301, 109
      %v1313 = vpop.permute.xlu0 %1312
      %1314 = vrot.lane.b32.xlu0 %v1303, 109
      %v1315 = vpop.permute.xlu0 %1314
      %1316 = vrot.lane.b32.xlu0 %v1305, 109
      %v1317 = vpop.permute.xlu0 %1316
      %1318 = vrot.lane.b32.xlu0 %v1300, 109
      %v1319 = vpop.permute.xlu0 %1318
      %1320 = vrot.lane.b32.xlu0 %v1302, 109
      %v1321 = vpop.permute.xlu0 %1320
      %1322 = vrot.lane.b32.xlu0 %v1304, 109
      %v1323 = vpop.permute.xlu0 %1322
      %v1324 = vsel %vm547, %v1307, %v1309
      %v1325 = vsel %vm547, %v1309, %v1311
      %v1326 = vsel %vm547, %v1313, %v1315
      %v1327 = vsel %vm547, %v1315, %v1317
      %v1328 = vsel %vm547, %v1319, %v1321
      %v1329 = vsel %vm547, %v1321, %v1323
      %1339 = vst [vmem:[#allocation3 + $0x1e0] sm:$0xf0] %v1324
      %1340 = vst [vmem:[#allocation3 + $0x1e8] sm:$0xf0] %v1325
      %1341 = vst.msk [vmem:[#allocation3 + $0x1f0] sm:$0xf0] %vm402, %v1311
      %1342 = vst [vmem:[#allocation3 + $0x1f8] sm:$0xff] %v1326
      %1343 = vst [vmem:[#allocation3 + $0x200] sm:$0xff] %v1327
      %1344 = vst.msk [vmem:[#allocation3 + $0x208] sm:$0xff] %vm311, %v1317
      %1345 = vst [vmem:[#allocation3 + $0x210] sm:$0xf] %v1328
      %1346 = vst [vmem:[#allocation3 + $0x218] sm:$0xf] %v1329
      %1347 = vst.msk [vmem:[#allocation3 + $0x220] sm:$0xf] %vm333, %v1323
      %v1348 = vld [vmem:[%s2] sm:$0xff]
      %v1349 = vld [vmem:[%s2 + $0x8] sm:$0xff]
      %v1350 = vld [vmem:[%s2 + $0x10] sm:$0xff]
      %v1351 = vld [vmem:[%s2 + $0x18] sm:$0xff]
      %v1352 = vld [vmem:[#allocation3] sm:$0xff]
      %v1353 = vld [vmem:[#allocation3 + $0x8] sm:$0xff]
      %v1354 = vld [vmem:[#allocation3 + $0x10] sm:$0xff]
      %v1355 = vld [vmem:[#allocation3 + $0x18] sm:$0xff]
      %v1356 = vld [vmem:[#allocation3 + $0x20] sm:$0xff]
      %v1357 = vld [vmem:[#allocation3 + $0x28] sm:$0xff]
      %v1358 = vld [vmem:[#allocation3 + $0x30] sm:$0xff]
      %v1359 = vld [vmem:[#allocation3 + $0x38] sm:$0xff]
      %v1360 = vld [vmem:[#allocation3 + $0x40] sm:$0xff]
      %v1361 = vld [vmem:[#allocation3 + $0x48] sm:$0xff]
      %v1362 = vld [vmem:[#allocation3 + $0x50] sm:$0xff]
      %v1363 = vld [vmem:[#allocation3 + $0x58] sm:$0xff]
      %v1364 = vld [vmem:[#allocation3 + $0x60] sm:$0xff]
      %v1365 = vld [vmem:[#allocation3 + $0x68] sm:$0xff]
      %v1366 = vld [vmem:[#allocation3 + $0x70] sm:$0xff]
      %v1367 = vld [vmem:[#allocation3 + $0x78] sm:$0xff]
      %v1368 = vld [vmem:[#allocation3 + $0x80] sm:$0xff]
      %v1369 = vld [vmem:[#allocation3 + $0x88] sm:$0xff]
      %v1370 = vld [vmem:[#allocation3 + $0x90] sm:$0xff]
      %v1371 = vld [vmem:[#allocation3 + $0x98] sm:$0xff]
      %v1372 = vld [vmem:[#allocation3 + $0xa0] sm:$0xff]
      %v1373 = vld [vmem:[#allocation3 + $0xa8] sm:$0xff]
      %v1374 = vld [vmem:[#allocation3 + $0xb0] sm:$0xff]
      %v1375 = vld [vmem:[#allocation3 + $0xb8] sm:$0xff]
      %v1376 = vld [vmem:[#allocation3 + $0xc0] sm:$0xff]
      %v1377 = vld [vmem:[#allocation3 + $0xc8] sm:$0xff]
      %v1378 = vld [vmem:[#allocation3 + $0xd0] sm:$0xff]
      %v1379 = vld [vmem:[#allocation3 + $0xd8] sm:$0xff]
      %v1380 = vld [vmem:[#allocation3 + $0xe0] sm:$0xff]
      %v1381 = vld [vmem:[#allocation3 + $0xe8] sm:$0xff]
      %v1382 = vld [vmem:[#allocation3 + $0xf0] sm:$0xff]
      %v1383 = vld [vmem:[#allocation3 + $0xf8] sm:$0xff]
      %v1384 = vld [vmem:[#allocation3 + $0x100] sm:$0xff]
      %v1385 = vld [vmem:[#allocation3 + $0x108] sm:$0xff]
      %v1386 = vld [vmem:[#allocation3 + $0x110] sm:$0xff]
      %v1387 = vld [vmem:[#allocation3 + $0x118] sm:$0xff]
      %v1388 = vld [vmem:[#allocation3 + $0x120] sm:$0xff]
      %v1389 = vld [vmem:[#allocation3 + $0x128] sm:$0xff]
      %v1390 = vld [vmem:[#allocation3 + $0x130] sm:$0xff]
      %v1391 = vld [vmem:[#allocation3 + $0x138] sm:$0xff]
      %v1392 = vld [vmem:[#allocation3 + $0x140] sm:$0xff]
      %v1393 = vld [vmem:[#allocation3 + $0x148] sm:$0xff]
      %v1394 = vld [vmem:[#allocation3 + $0x150] sm:$0xff]
      %v1395 = vld [vmem:[#allocation3 + $0x158] sm:$0xff]
      %v1396 = vld [vmem:[#allocation3 + $0x160] sm:$0xff]
      %v1397 = vld [vmem:[#allocation3 + $0x168] sm:$0xff]
      %v1398 = vld [vmem:[#allocation3 + $0x170] sm:$0xff]
      %v1399 = vld [vmem:[#allocation3 + $0x178] sm:$0xff]
      %v1400 = vld [vmem:[#allocation3 + $0x180] sm:$0xff]
      %v1401 = vld [vmem:[#allocation3 + $0x188] sm:$0xff]
      %v1402 = vld [vmem:[#allocation3 + $0x190] sm:$0xff]
      %v1403 = vld [vmem:[#allocation3 + $0x198] sm:$0xff]
      %v1404 = vld [vmem:[#allocation3 + $0x1a0] sm:$0xff]
      %v1405 = vld [vmem:[#allocation3 + $0x1a8] sm:$0xff]
      %v1406 = vld [vmem:[#allocation3 + $0x1b0] sm:$0xff]
      %v1407 = vld [vmem:[#allocation3 + $0x1b8] sm:$0xff]
      %v1408 = vld [vmem:[#allocation3 + $0x1c0] sm:$0xff]
      %v1409 = vld [vmem:[#allocation3 + $0x1c8] sm:$0xff]
      %v1410 = vld [vmem:[#allocation3 + $0x1d0] sm:$0xff]
      %v1411 = vld [vmem:[#allocation3 + $0x1d8] sm:$0xff]
      %v1412 = vld [vmem:[#allocation3 + $0x1e0] sm:$0xff]
      %v1413 = vld [vmem:[#allocation3 + $0x1e8] sm:$0xff]
      %v1414 = vld [vmem:[#allocation3 + $0x1f0] sm:$0xff]
      %v1415 = vld [vmem:[#allocation3 + $0x1f8] sm:$0xff]
      %v1416 = vld [vmem:[#allocation3 + $0x200] sm:$0xff]
      %v1417 = vld [vmem:[#allocation3 + $0x208] sm:$0xff]
      %v1418 = vld [vmem:[#allocation3 + $0x210] sm:$0xf]
      %v1419 = vld [vmem:[#allocation3 + $0x218] sm:$0xf]
      %v1420 = vld [vmem:[#allocation3 + $0x220] sm:$0xf]
      %v1421 = vld [vmem:[%s5] sm:$0xff]
      %v1422 = vld [vmem:[%s5 + $0x8] sm:$0xff]
      %1424 = vset.pattern.permute.xlu0 0
      %1425 = vperm.xlu0 %1424, %v1421
      %v1426 = vpop.permute.xlu0 %1425
      %1429 = vset.pattern.permute.xlu0 0
      %1430 = vperm.xlu0 %1429, %v1422
      %v1431 = vpop.permute.xlu0 %1430
      %vm1433 = vcmask 424960
      %v1435 = vsel %vm1433, %v1349, 0
      %v1438 = vsel %vm1433, %v1351, 0
      %v1441 = vsel %vm592, %v1418, 0
      %v1444 = vsel %vm592, %v1419, 0
      %v1447 = vsel %vm592, %v1420, 0
      %1449 = vmatpush.msra.mxu0 %v1397
      %1450 = vmatpush.msra.mxu0 %v1394
      %1451 = vmatpush.msra.mxu0 %v1391
      %1452 = vmatpush.msra.mxu0 %v1388
      %1453 = vmatpush.msra.mxu0 %v1385
      %1454 = vmatpush.msra.mxu0 %v1382
      %1455 = vmatpush.msra.mxu0 %v1379
      %1456 = vmatpush.msra.mxu0 %v1376
      %1457 = vmatpush.msra.mxu0 %v1373
      %1458 = vmatpush.msra.mxu0 %v1370
      %1459 = vmatpush.msra.mxu0 %v1367
      %1460 = vmatpush.msra.mxu0 %v1364
      %1461 = vmatpush.msra.mxu0 %v1361
      %1462 = vmatpush.msra.mxu0 %v1358
      %1463 = vmatpush.msra.mxu0 %v1355
      %1464 = vmatpush.msra.mxu0 %v1352
      %1465 = vmatmul.f32.gmra.mxu0 %v1348
      %v1466 = vpop.f32.mrf.mxu0
      %v1467 = vadd.f32 %v1426, %v1466
      %1468 = vmatmul.f32.gmra.mxu0 %v1350
      %v1469 = vpop.f32.mrf.mxu0
      %v1470 = vadd.f32 %v1431, %v1469
      %1471 = vdwg.mxu0
      %1472 = vmatpush.msra.mxu0 0.0
      %1473 = vmatpush.msra.mxu0 0.0
      %1474 = vmatpush.msra.mxu0 0.0
      %1475 = vmatpush.msra.mxu0 0.0
      %1476 = vmatpush.msra.mxu0 0.0
      %1477 = vmatpush.msra.mxu0 0.0
      %1478 = vmatpush.msra.mxu0 0.0
      %1479 = vmatpush.msra.mxu0 0.0
      %1480 = vmatpush.msra.mxu0 0.0
      %1481 = vmatpush.msra.mxu0 %v1441
      %1482 = vmatpush.msra.mxu0 %v1415
      %1483 = vmatpush.msra.mxu0 %v1412
      %1484 = vmatpush.msra.mxu0 %v1409
      %1485 = vmatpush.msra.mxu0 %v1406
      %1486 = vmatpush.msra.mxu0 %v1403
      %1487 = vmatpush.msra.mxu0 %v1400
      %1488 = vmatmul.f32.gmra.mxu0 %v1435
      %v1489 = vpop.f32.mrf.mxu0
      %v1490 = vadd.f32 %v1467, %v1489
      %1491 = vmatmul.f32.gmra.mxu0 %v1438
      %v1492 = vpop.f32.mrf.mxu0
      %v1493 = vadd.f32 %v1470, %v1492
      %1494 = vdwg.mxu0
      %1495 = vmatpush.msra.mxu0 %v1398
      %1496 = vmatpush.msra.mxu0 %v1395
      %1497 = vmatpush.msra.mxu0 %v1392
      %1498 = vmatpush.msra.mxu0 %v1389
      %1499 = vmatpush.msra.mxu0 %v1386
      %1500 = vmatpush.msra.mxu0 %v1383
      %1501 = vmatpush.msra.mxu0 %v1380
      %1502 = vmatpush.msra.mxu0 %v1377
      %1503 = vmatpush.msra.mxu0 %v1374
      %1504 = vmatpush.msra.mxu0 %v1371
      %1505 = vmatpush.msra.mxu0 %v1368
      %1506 = vmatpush.msra.mxu0 %v1365
      %1507 = vmatpush.msra.mxu0 %v1362
      %1508 = vmatpush.msra.mxu0 %v1359
      %1509 = vmatpush.msra.mxu0 %v1356
      %1510 = vmatpush.msra.mxu0 %v1353
      %1511 = vmatmul.f32.gmra.mxu0 %v1348
      %v1512 = vpop.f32.mrf.mxu0
      %v1513 = vadd.f32 %v1426, %v1512
      %1514 = vmatmul.f32.gmra.mxu0 %v1350
      %v1515 = vpop.f32.mrf.mxu0
      %v1516 = vadd.f32 %v1431, %v1515
      %1517 = vdwg.mxu0
      %1518 = vmatpush.msra.mxu0 0.0
      %1519 = vmatpush.msra.mxu0 0.0
      %1520 = vmatpush.msra.mxu0 0.0
      %1521 = vmatpush.msra.mxu0 0.0
      %1522 = vmatpush.msra.mxu0 0.0
      %1523 = vmatpush.msra.mxu0 0.0
      %1524 = vmatpush.msra.mxu0 0.0
      %1525 = vmatpush.msra.mxu0 0.0
      %1526 = vmatpush.msra.mxu0 0.0
      %1527 = vmatpush.msra.mxu0 %v1444
      %1528 = vmatpush.msra.mxu0 %v1416
      %1529 = vmatpush.msra.mxu0 %v1413
      %1530 = vmatpush.msra.mxu0 %v1410
      %1531 = vmatpush.msra.mxu0 %v1407
      %1532 = vmatpush.msra.mxu0 %v1404
      %1533 = vmatpush.msra.mxu0 %v1401
      %1534 = vmatmul.f32.gmra.mxu0 %v1435
      %v1535 = vpop.f32.mrf.mxu0
      %v1536 = vadd.f32 %v1513, %v1535
      %1537 = vmatmul.f32.gmra.mxu0 %v1438
      %v1538 = vpop.f32.mrf.mxu0
      %v1539 = vadd.f32 %v1516, %v1538
      %1540 = vdwg.mxu0
      %1541 = vmatpush.msra.mxu0 %v1399
      %1542 = vmatpush.msra.mxu0 %v1396
      %1543 = vmatpush.msra.mxu0 %v1393
      %1544 = vmatpush.msra.mxu0 %v1390
      %1545 = vmatpush.msra.mxu0 %v1387
      %1546 = vmatpush.msra.mxu0 %v1384
      %1547 = vmatpush.msra.mxu0 %v1381
      %1548 = vmatpush.msra.mxu0 %v1378
      %1549 = vmatpush.msra.mxu0 %v1375
      %1550 = vmatpush.msra.mxu0 %v1372
      %1551 = vmatpush.msra.mxu0 %v1369
      %1552 = vmatpush.msra.mxu0 %v1366
      %1553 = vmatpush.msra.mxu0 %v1363
      %1554 = vmatpush.msra.mxu0 %v1360
      %1555 = vmatpush.msra.mxu0 %v1357
      %1556 = vmatpush.msra.mxu0 %v1354
      %1557 = vmatmul.f32.gmra.mxu0 %v1348
      %v1558 = vpop.f32.mrf.mxu0
      %v1559 = vadd.f32 %v1426, %v1558
      %1560 = vmatmul.f32.gmra.mxu0 %v1350
      %v1561 = vpop.f32.mrf.mxu0
      %v1562 = vadd.f32 %v1431, %v1561
      %1563 = vdwg.mxu0
      %1564 = vmatpush.msra.mxu0 0.0
      %1565 = vmatpush.msra.mxu0 0.0
      %1566 = vmatpush.msra.mxu0 0.0
      %1567 = vmatpush.msra.mxu0 0.0
      %1568 = vmatpush.msra.mxu0 0.0
      %1569 = vmatpush.msra.mxu0 0.0
      %1570 = vmatpush.msra.mxu0 0.0
      %1571 = vmatpush.msra.mxu0 0.0
      %1572 = vmatpush.msra.mxu0 0.0
      %1573 = vmatpush.msra.mxu0 %v1447
      %1574 = vmatpush.msra.mxu0 %v1417
      %1575 = vmatpush.msra.mxu0 %v1414
      %1576 = vmatpush.msra.mxu0 %v1411
      %1577 = vmatpush.msra.mxu0 %v1408
      %1578 = vmatpush.msra.mxu0 %v1405
      %1579 = vmatpush.msra.mxu0 %v1402
      %1580 = vmatmul.f32.gmra.mxu0 %v1435
      %v1581 = vpop.f32.mrf.mxu0
      %v1582 = vadd.f32 %v1559, %v1581
      %1583 = vmatmul.f32.gmra.mxu0 %v1438
      %v1584 = vpop.f32.mrf.mxu0
      %v1585 = vadd.f32 %v1562, %v1584
      %1586 = vdwg.mxu0
      %vm1587 = vcmp.gt.f32.partialorder %v1490, 0.0
      %vm1588 = vcmp.gt.f32.partialorder %v1536, 0.0
      %vm1589 = vcmp.gt.f32.partialorder %v1582, 0.0
      %vm1590 = vcmp.gt.f32.partialorder %v1493, 0.0
      %vm1591 = vcmp.gt.f32.partialorder %v1539, 0.0
      %vm1592 = vcmp.gt.f32.partialorder %v1585, 0.0
      %v1593 = vmul.f32 %v1490, 0.01
      %v1594 = vmul.f32 %v1536, 0.01
      %v1595 = vmul.f32 %v1582, 0.01
      %v1596 = vmul.f32 %v1493, 0.01
      %v1597 = vmul.f32 %v1539, 0.01
      %v1598 = vmul.f32 %v1585, 0.01
      %v1599 = vsel %vm1587, %v1490, %v1593
      %v1600 = vsel %vm1588, %v1536, %v1594
      %v1601 = vsel %vm1589, %v1582, %v1595
      %v1602 = vsel %vm1590, %v1493, %v1596
      %v1603 = vsel %vm1591, %v1539, %v1597
      %v1604 = vsel %vm1592, %v1585, %v1598
      %v1605 = vmul.f32 %v1599, %v690
      %v1606 = vmul.f32 %v1600, %v691
      %v1607 = vmul.f32 %v1601, %v692
      %v1608 = vmul.f32 %v1602, %v690
      %v1609 = vmul.f32 %v1603, %v691
      %v1610 = vmul.f32 %v1604, %v692
      %v1617 = vrot.slane %v1605, 4
      %v1618 = vrot.slane %v1606, 4
      %v1619 = vrot.slane %v1607, 4
      %v1620 = vrot.slane %v1608, 4
      %v1621 = vsel %vm592, %v1617, %v1620
      %v1622 = vrot.slane %v1609, 4
      %v1623 = vsel %vm592, %v1618, %v1622
      %v1624 = vrot.slane %v1610, 4
      %v1625 = vsel %vm592, %v1619, %v1624
      %1635 = vst [vmem:[%s305 + $0x30] sm:$0xf0] %v1617
      %1636 = vst [vmem:[%s305 + $0x38] sm:$0xf0] %v1618
      %1637 = vst.msk [vmem:[%s305 + $0x40] sm:$0xf0] %vm402, %v1619
      %1638 = vst [vmem:[%s305 + $0x48] sm:$0xff] %v1621
      %1639 = vst [vmem:[%s305 + $0x50] sm:$0xff] %v1623
      %1640 = vst.msk [vmem:[%s305 + $0x58] sm:$0xff] %vm311, %v1625
      %1641 = vst [vmem:[%s305 + $0x60] sm:$0xf] %v1620
      %1642 = vst [vmem:[%s305 + $0x68] sm:$0xf] %v1622
      %1643 = vst.msk [vmem:[%s305 + $0x70] sm:$0xf] %vm333, %v1624
      %1644 = vst [vmem:[#allocation2 + $0x8] sm:$0xff] %v1605
      %1645 = vst [vmem:[#allocation2 + $0x10] sm:$0xff] %v1606
      %1646 = vst.msk [vmem:[#allocation2 + $0x18] sm:$0xff] %vm311, %v1607
      %1647 = vst [vmem:[#allocation2 + $0x30] sm:$0xff] %v1608
      %1648 = vst [vmem:[#allocation2 + $0x38] sm:$0xff] %v1609
      %1649 = vst.msk [vmem:[#allocation2 + $0x40] sm:$0xff] %vm311, %v1610
      %v1650 = vld [vmem:[#allocation2] sm:$0xff]
      %v1651 = vld [vmem:[#allocation2 + $0x8] sm:$0xff]
      %v1652 = vld [vmem:[#allocation2 + $0x10] sm:$0xff]
      %v1653 = vld [vmem:[#allocation2 + $0x18] sm:$0xff]
      %v1654 = vld [vmem:[#allocation2 + $0x28] sm:$0xff]
      %v1655 = vld [vmem:[#allocation2 + $0x30] sm:$0xff]
      %v1656 = vld [vmem:[#allocation2 + $0x38] sm:$0xff]
      %v1657 = vld [vmem:[#allocation2 + $0x40] sm:$0xff]
      %v1666 = vrot.slane %v1650, 4
      %v1667 = vrot.slane %v1651, 4
      %v1668 = vrot.slane %v1652, 4
      %v1669 = vrot.slane %v1653, 4
      %v1670 = vrot.slane %v1654, 4
      %v1671 = vsel %vm592, %v1666, %v1670
      %v1672 = vrot.slane %v1655, 4
      %v1673 = vsel %vm592, %v1667, %v1672
      %v1674 = vrot.slane %v1656, 4
      %v1675 = vsel %vm592, %v1668, %v1674
      %v1676 = vrot.slane %v1657, 4
      %v1677 = vsel %vm592, %v1669, %v1676
      %1678 = vrot.lane.b32.xlu0 %v1666, 19
      %v1679 = vpop.permute.xlu0 %1678
      %1680 = vrot.lane.b32.xlu0 %v1667, 19
      %v1681 = vpop.permute.xlu0 %1680
      %1682 = vrot.lane.b32.xlu0 %v1668, 19
      %v1683 = vpop.permute.xlu0 %1682
      %1684 = vrot.lane.b32.xlu0 %v1669, 19
      %v1685 = vpop.permute.xlu0 %1684
      %1686 = vrot.lane.b32.xlu0 %v1671, 19
      %v1687 = vpop.permute.xlu0 %1686
      %1688 = vrot.lane.b32.xlu0 %v1673, 19
      %v1689 = vpop.permute.xlu0 %1688
      %1690 = vrot.lane.b32.xlu0 %v1675, 19
      %v1691 = vpop.permute.xlu0 %1690
      %1692 = vrot.lane.b32.xlu0 %v1677, 19
      %v1693 = vpop.permute.xlu0 %1692
      %1694 = vrot.lane.b32.xlu0 %v1670, 19
      %v1695 = vpop.permute.xlu0 %1694
      %1696 = vrot.lane.b32.xlu0 %v1672, 19
      %v1697 = vpop.permute.xlu0 %1696
      %1698 = vrot.lane.b32.xlu0 %v1674, 19
      %v1699 = vpop.permute.xlu0 %1698
      %1700 = vrot.lane.b32.xlu0 %v1676, 19
      %v1701 = vpop.permute.xlu0 %1700
      %v1702 = vsel %vm363, %v1679, %v1681
      %v1703 = vsel %vm363, %v1681, %v1683
      %v1704 = vsel %vm363, %v1683, %v1685
      %v1705 = vsel %vm363, %v1687, %v1689
      %v1706 = vsel %vm363, %v1689, %v1691
      %v1707 = vsel %vm363, %v1691, %v1693
      %v1708 = vsel %vm363, %v1695, %v1697
      %v1709 = vsel %vm363, %v1697, %v1699
      %v1710 = vsel %vm363, %v1699, %v1701
      %1720 = vst [vmem:[#allocation3 + $0x210] sm:$0xf0] %v1702
      %1721 = vst [vmem:[#allocation3 + $0x218] sm:$0xf0] %v1703
      %1722 = vst.msk [vmem:[#allocation3 + $0x220] sm:$0xf0] %vm402, %v1704
      %1723 = vst [vmem:[#allocation3 + $0x228] sm:$0xff] %v1705
      %1724 = vst [vmem:[#allocation3 + $0x230] sm:$0xff] %v1706
      %1725 = vst.msk [vmem:[#allocation3 + $0x238] sm:$0xff] %vm311, %v1707
      %1726 = vst [vmem:[#allocation3 + $0x240] sm:$0xf] %v1708
      %1727 = vst [vmem:[#allocation3 + $0x248] sm:$0xf] %v1709
      %1728 = vst.msk [vmem:[#allocation3 + $0x250] sm:$0xf] %vm333, %v1710
      %v1729 = vld [vmem:[#allocation2] sm:$0xff]
      %v1730 = vld [vmem:[#allocation2 + $0x8] sm:$0xff]
      %v1731 = vld [vmem:[#allocation2 + $0x10] sm:$0xff]
      %v1732 = vld [vmem:[#allocation2 + $0x18] sm:$0xff]
      %v1733 = vld [vmem:[#allocation2 + $0x28] sm:$0xff]
      %v1734 = vld [vmem:[#allocation2 + $0x30] sm:$0xff]
      %v1735 = vld [vmem:[#allocation2 + $0x38] sm:$0xff]
      %v1736 = vld [vmem:[#allocation2 + $0x40] sm:$0xff]
      %v1745 = vrot.slane %v1729, 4
      %v1746 = vrot.slane %v1730, 4
      %v1747 = vrot.slane %v1731, 4
      %v1748 = vrot.slane %v1732, 4
      %v1749 = vrot.slane %v1733, 4
      %v1750 = vsel %vm592, %v1745, %v1749
      %v1751 = vrot.slane %v1734, 4
      %v1752 = vsel %vm592, %v1746, %v1751
      %v1753 = vrot.slane %v1735, 4
      %v1754 = vsel %vm592, %v1747, %v1753
      %v1755 = vrot.slane %v1736, 4
      %v1756 = vsel %vm592, %v1748, %v1755
      %1757 = vrot.lane.b32.xlu0 %v1745, 18
      %v1758 = vpop.permute.xlu0 %1757
      %1759 = vrot.lane.b32.xlu0 %v1746, 18
      %v1760 = vpop.permute.xlu0 %1759
      %1761 = vrot.lane.b32.xlu0 %v1747, 18
      %v1762 = vpop.permute.xlu0 %1761
      %1763 = vrot.lane.b32.xlu0 %v1748, 18
      %v1764 = vpop.permute.xlu0 %1763
      %1765 = vrot.lane.b32.xlu0 %v1750, 18
      %v1766 = vpop.permute.xlu0 %1765
      %1767 = vrot.lane.b32.xlu0 %v1752, 18
      %v1768 = vpop.permute.xlu0 %1767
      %1769 = vrot.lane.b32.xlu0 %v1754, 18
      %v1770 = vpop.permute.xlu0 %1769
      %1771 = vrot.lane.b32.xlu0 %v1756, 18
      %v1772 = vpop.permute.xlu0 %1771
      %1773 = vrot.lane.b32.xlu0 %v1749, 18
      %v1774 = vpop.permute.xlu0 %1773
      %1775 = vrot.lane.b32.xlu0 %v1751, 18
      %v1776 = vpop.permute.xlu0 %1775
      %1777 = vrot.lane.b32.xlu0 %v1753, 18
      %v1778 = vpop.permute.xlu0 %1777
      %1779 = vrot.lane.b32.xlu0 %v1755, 18
      %v1780 = vpop.permute.xlu0 %1779
      %v1781 = vsel %vm393, %v1758, %v1760
      %v1782 = vsel %vm393, %v1760, %v1762
      %v1783 = vsel %vm393, %v1762, %v1764
      %v1784 = vsel %vm393, %v1766, %v1768
      %v1785 = vsel %vm393, %v1768, %v1770
      %v1786 = vsel %vm393, %v1770, %v1772
      %v1787 = vsel %vm393, %v1774, %v1776
      %v1788 = vsel %vm393, %v1776, %v1778
      %v1789 = vsel %vm393, %v1778, %v1780
      %1799 = vst [vmem:[#allocation3 + $0x240] sm:$0xf0] %v1781
      %1800 = vst [vmem:[#allocation3 + $0x248] sm:$0xf0] %v1782
      %1801 = vst.msk [vmem:[#allocation3 + $0x250] sm:$0xf0] %vm402, %v1783
      %1802 = vst [vmem:[#allocation3 + $0x258] sm:$0xff] %v1784
      %1803 = vst [vmem:[#allocation3 + $0x260] sm:$0xff] %v1785
      %1804 = vst.msk [vmem:[#allocation3 + $0x268] sm:$0xff] %vm311, %v1786
      %1805 = vst [vmem:[#allocation3 + $0x270] sm:$0xf] %v1787
      %1806 = vst [vmem:[#allocation3 + $0x278] sm:$0xf] %v1788
      %1807 = vst.msk [vmem:[#allocation3 + $0x280] sm:$0xf] %vm333, %v1789
      %v1808 = vld [vmem:[#allocation2] sm:$0xff]
      %v1809 = vld [vmem:[#allocation2 + $0x8] sm:$0xff]
      %v1810 = vld [vmem:[#allocation2 + $0x10] sm:$0xff]
      %v1811 = vld [vmem:[#allocation2 + $0x18] sm:$0xff]
      %v1812 = vld [vmem:[#allocation2 + $0x28] sm:$0xff]
      %v1813 = vld [vmem:[#allocation2 + $0x30] sm:$0xff]
      %v1814 = vld [vmem:[#allocation2 + $0x38] sm:$0xff]
      %v1815 = vld [vmem:[#allocation2 + $0x40] sm:$0xff]
      %v1824 = vrot.slane %v1808, 4
      %v1825 = vrot.slane %v1809, 4
      %v1826 = vrot.slane %v1810, 4
      %v1827 = vrot.slane %v1811, 4
      %v1828 = vrot.slane %v1812, 4
      %v1829 = vsel %vm592, %v1824, %v1828
      %v1830 = vrot.slane %v1813, 4
      %v1831 = vsel %vm592, %v1825, %v1830
      %v1832 = vrot.slane %v1814, 4
      %v1833 = vsel %vm592, %v1826, %v1832
      %v1834 = vrot.slane %v1815, 4
      %v1835 = vsel %vm592, %v1827, %v1834
      %1836 = vrot.lane.b32.xlu0 %v1824, 17
      %v1837 = vpop.permute.xlu0 %1836
      %1838 = vrot.lane.b32.xlu0 %v1825, 17
      %v1839 = vpop.permute.xlu0 %1838
      %1840 = vrot.lane.b32.xlu0 %v1826, 17
      %v1841 = vpop.permute.xlu0 %1840
      %1842 = vrot.lane.b32.xlu0 %v1827, 17
      %v1843 = vpop.permute.xlu0 %1842
      %1844 = vrot.lane.b32.xlu0 %v1829, 17
      %v1845 = vpop.permute.xlu0 %1844
      %1846 = vrot.lane.b32.xlu0 %v1831, 17
      %v1847 = vpop.permute.xlu0 %1846
      %1848 = vrot.lane.b32.xlu0 %v1833, 17
      %v1849 = vpop.permute.xlu0 %1848
      %1850 = vrot.lane.b32.xlu0 %v1835, 17
      %v1851 = vpop.permute.xlu0 %1850
      %1852 = vrot.lane.b32.xlu0 %v1828, 17
      %v1853 = vpop.permute.xlu0 %1852
      %1854 = vrot.lane.b32.xlu0 %v1830, 17
      %v1855 = vpop.permute.xlu0 %1854
      %1856 = vrot.lane.b32.xlu0 %v1832, 17
      %v1857 = vpop.permute.xlu0 %1856
      %1858 = vrot.lane.b32.xlu0 %v1834, 17
      %v1859 = vpop.permute.xlu0 %1858
      %v1860 = vsel %vm420, %v1837, %v1839
      %v1861 = vsel %vm420, %v1839, %v1841
      %v1862 = vsel %vm420, %v1841, %v1843
      %v1863 = vsel %vm420, %v1845, %v1847
      %v1864 = vsel %vm420, %v1847, %v1849
      %v1865 = vsel %vm420, %v1849, %v1851
      %v1866 = vsel %vm420, %v1853, %v1855
      %v1867 = vsel %vm420, %v1855, %v1857
      %v1868 = vsel %vm420, %v1857, %v1859
      %1878 = vst [vmem:[#allocation3 + $0x270] sm:$0xf0] %v1860
      %1879 = vst [vmem:[#allocation3 + $0x278] sm:$0xf0] %v1861
      %1880 = vst.msk [vmem:[#allocation3 + $0x280] sm:$0xf0] %vm402, %v1862
      %1881 = vst [vmem:[#allocation3 + $0x288] sm:$0xff] %v1863
      %1882 = vst [vmem:[#allocation3 + $0x290] sm:$0xff] %v1864
      %1883 = vst.msk [vmem:[#allocation3 + $0x298] sm:$0xff] %vm311, %v1865
      %1884 = vst [vmem:[#allocation3 + $0x2a0] sm:$0xf] %v1866
      %1885 = vst [vmem:[#allocation3 + $0x2a8] sm:$0xf] %v1867
      %1886 = vst.msk [vmem:[#allocation3 + $0x2b0] sm:$0xf] %vm333, %v1868
      %v1887 = vld [vmem:[#allocation2] sm:$0xff]
      %v1888 = vld [vmem:[#allocation2 + $0x8] sm:$0xff]
      %v1889 = vld [vmem:[#allocation2 + $0x10] sm:$0xff]
      %v1890 = vld [vmem:[#allocation2 + $0x18] sm:$0xff]
      %v1891 = vld [vmem:[#allocation2 + $0x28] sm:$0xff]
      %v1892 = vld [vmem:[#allocation2 + $0x30] sm:$0xff]
      %v1893 = vld [vmem:[#allocation2 + $0x38] sm:$0xff]
      %v1894 = vld [vmem:[#allocation2 + $0x40] sm:$0xff]
      %v1903 = vrot.slane %v1887, 4
      %v1904 = vrot.slane %v1888, 4
      %v1905 = vrot.slane %v1889, 4
      %v1906 = vrot.slane %v1890, 4
      %v1907 = vrot.slane %v1891, 4
      %v1908 = vsel %vm592, %v1903, %v1907
      %v1909 = vrot.slane %v1892, 4
      %v1910 = vsel %vm592, %v1904, %v1909
      %v1911 = vrot.slane %v1893, 4
      %v1912 = vsel %vm592, %v1905, %v1911
      %v1913 = vrot.slane %v1894, 4
      %v1914 = vsel %vm592, %v1906, %v1913
      %1915 = vrot.lane.b32.xlu0 %v1903, 1
      %v1916 = vpop.permute.xlu0 %1915
      %1917 = vrot.lane.b32.xlu0 %v1904, 1
      %v1918 = vpop.permute.xlu0 %1917
      %1919 = vrot.lane.b32.xlu0 %v1905, 1
      %v1920 = vpop.permute.xlu0 %1919
      %1921 = vrot.lane.b32.xlu0 %v1906, 1
      %v1922 = vpop.permute.xlu0 %1921
      %1923 = vrot.lane.b32.xlu0 %v1908, 1
      %v1924 = vpop.permute.xlu0 %1923
      %1925 = vrot.lane.b32.xlu0 %v1910, 1
      %v1926 = vpop.permute.xlu0 %1925
      %1927 = vrot.lane.b32.xlu0 %v1912, 1
      %v1928 = vpop.permute.xlu0 %1927
      %1929 = vrot.lane.b32.xlu0 %v1914, 1
      %v1930 = vpop.permute.xlu0 %1929
      %1931 = vrot.lane.b32.xlu0 %v1907, 1
      %v1932 = vpop.permute.xlu0 %1931
      %1933 = vrot.lane.b32.xlu0 %v1909, 1
      %v1934 = vpop.permute.xlu0 %1933
      %1935 = vrot.lane.b32.xlu0 %v1911, 1
      %v1936 = vpop.permute.xlu0 %1935
      %1937 = vrot.lane.b32.xlu0 %v1913, 1
      %v1938 = vpop.permute.xlu0 %1937
      %v1939 = vsel %vm450, %v1916, %v1918
      %v1940 = vsel %vm450, %v1918, %v1920
      %v1941 = vsel %vm450, %v1920, %v1922
      %v1942 = vsel %vm450, %v1924, %v1926
      %v1943 = vsel %vm450, %v1926, %v1928
      %v1944 = vsel %vm450, %v1928, %v1930
      %v1945 = vsel %vm450, %v1932, %v1934
      %v1946 = vsel %vm450, %v1934, %v1936
      %v1947 = vsel %vm450, %v1936, %v1938
      %1957 = vst [vmem:[#allocation3 + $0x2a0] sm:$0xf0] %v1939
      %1958 = vst [vmem:[#allocation3 + $0x2a8] sm:$0xf0] %v1940
      %1959 = vst.msk [vmem:[#allocation3 + $0x2b0] sm:$0xf0] %vm402, %v1941
      %1960 = vst [vmem:[#allocation3 + $0x2b8] sm:$0xff] %v1942
      %1961 = vst [vmem:[#allocation3 + $0x2c0] sm:$0xff] %v1943
      %1962 = vst.msk [vmem:[#allocation3 + $0x2c8] sm:$0xff] %vm311, %v1944
      %1963 = vst [vmem:[#allocation3 + $0x2d0] sm:$0xf] %v1945
      %1964 = vst [vmem:[#allocation3 + $0x2d8] sm:$0xf] %v1946
      %1965 = vst.msk [vmem:[#allocation3 + $0x2e0] sm:$0xf] %vm333, %v1947
      %v1966 = vld [vmem:[#allocation2 + $0x8] sm:$0xff]
      %v1967 = vld [vmem:[#allocation2 + $0x10] sm:$0xff]
      %v1968 = vld [vmem:[#allocation2 + $0x18] sm:$0xff]
      %v1969 = vld [vmem:[#allocation2 + $0x30] sm:$0xff]
      %v1970 = vld [vmem:[#allocation2 + $0x38] sm:$0xff]
      %v1971 = vld [vmem:[#allocation2 + $0x40] sm:$0xff]
      %v1978 = vrot.slane %v1966, 4
      %v1979 = vrot.slane %v1967, 4
      %v1980 = vrot.slane %v1968, 4
      %v1981 = vrot.slane %v1969, 4
      %v1982 = vsel %vm592, %v1978, %v1981
      %v1983 = vrot.slane %v1970, 4
      %v1984 = vsel %vm592, %v1979, %v1983
      %v1985 = vrot.slane %v1971, 4
      %v1986 = vsel %vm592, %v1980, %v1985
      %1996 = vst [vmem:[#allocation3 + $0x2d0] sm:$0xf0] %v1978
      %1997 = vst [vmem:[#allocation3 + $0x2d8] sm:$0xf0] %v1979
      %1998 = vst.msk [vmem:[#allocation3 + $0x2e0] sm:$0xf0] %vm402, %v1980
      %1999 = vst [vmem:[#allocation3 + $0x2e8] sm:$0xff] %v1982
      %2000 = vst [vmem:[#allocation3 + $0x2f0] sm:$0xff] %v1984
      %2001 = vst.msk [vmem:[#allocation3 + $0x2f8] sm:$0xff] %vm311, %v1986
      %2002 = vst [vmem:[#allocation3 + $0x300] sm:$0xf] %v1981
      %2003 = vst [vmem:[#allocation3 + $0x308] sm:$0xf] %v1983
      %2004 = vst.msk [vmem:[#allocation3 + $0x310] sm:$0xf] %vm333, %v1985
      %v2005 = vld [vmem:[#allocation2 + $0x8] sm:$0xff]
      %v2006 = vld [vmem:[#allocation2 + $0x10] sm:$0xff]
      %v2007 = vld [vmem:[#allocation2 + $0x18] sm:$0xff]
      %v2008 = vld [vmem:[#allocation2 + $0x30] sm:$0xff]
      %v2009 = vld [vmem:[#allocation2 + $0x38] sm:$0xff]
      %v2010 = vld [vmem:[#allocation2 + $0x40] sm:$0xff]
      %v2017 = vrot.slane %v2005, 4
      %v2018 = vrot.slane %v2006, 4
      %v2019 = vrot.slane %v2007, 4
      %v2020 = vrot.slane %v2008, 4
      %v2021 = vsel %vm592, %v2017, %v2020
      %v2022 = vrot.slane %v2009, 4
      %v2023 = vsel %vm592, %v2018, %v2022
      %v2024 = vrot.slane %v2010, 4
      %v2025 = vsel %vm592, %v2019, %v2024
      %2026 = vrot.lane.b32.xlu0 %v2017, 127
      %v2027 = vpop.permute.xlu0 %2026
      %2028 = vrot.lane.b32.xlu0 %v2018, 127
      %v2029 = vpop.permute.xlu0 %2028
      %2030 = vrot.lane.b32.xlu0 %v2019, 127
      %v2031 = vpop.permute.xlu0 %2030
      %2032 = vrot.lane.b32.xlu0 %v2021, 127
      %v2033 = vpop.permute.xlu0 %2032
      %2034 = vrot.lane.b32.xlu0 %v2023, 127
      %v2035 = vpop.permute.xlu0 %2034
      %2036 = vrot.lane.b32.xlu0 %v2025, 127
      %v2037 = vpop.permute.xlu0 %2036
      %2038 = vrot.lane.b32.xlu0 %v2020, 127
      %v2039 = vpop.permute.xlu0 %2038
      %2040 = vrot.lane.b32.xlu0 %v2022, 127
      %v2041 = vpop.permute.xlu0 %2040
      %2042 = vrot.lane.b32.xlu0 %v2024, 127
      %v2043 = vpop.permute.xlu0 %2042
      %v2044 = vsel %vm481, %v2027, %v2029
      %v2045 = vsel %vm481, %v2029, %v2031
      %v2046 = vsel %vm481, %v2033, %v2035
      %v2047 = vsel %vm481, %v2035, %v2037
      %v2048 = vsel %vm481, %v2039, %v2041
      %v2049 = vsel %vm481, %v2041, %v2043
      %2059 = vst [vmem:[#allocation3 + $0x300] sm:$0xf0] %v2044
      %2060 = vst [vmem:[#allocation3 + $0x308] sm:$0xf0] %v2045
      %2061 = vst.msk [vmem:[#allocation3 + $0x310] sm:$0xf0] %vm402, %v2031
      %2062 = vst [vmem:[#allocation3 + $0x318] sm:$0xff] %v2046
      %2063 = vst [vmem:[#allocation3 + $0x320] sm:$0xff] %v2047
      %2064 = vst.msk [vmem:[#allocation3 + $0x328] sm:$0xff] %vm311, %v2037
      %2065 = vst [vmem:[#allocation3 + $0x330] sm:$0xf] %v2048
      %2066 = vst [vmem:[#allocation3 + $0x338] sm:$0xf] %v2049
      %2067 = vst.msk [vmem:[#allocation3 + $0x340] sm:$0xf] %vm333, %v2043
      %v2068 = vld [vmem:[#allocation2 + $0x8] sm:$0xff]
      %v2069 = vld [vmem:[#allocation2 + $0x10] sm:$0xff]
      %v2070 = vld [vmem:[#allocation2 + $0x18] sm:$0xff]
      %v2071 = vld [vmem:[#allocation2 + $0x30] sm:$0xff]
      %v2072 = vld [vmem:[#allocation2 + $0x38] sm:$0xff]
      %v2073 = vld [vmem:[#allocation2 + $0x40] sm:$0xff]
      %v2080 = vrot.slane %v2068, 4
      %v2081 = vrot.slane %v2069, 4
      %v2082 = vrot.slane %v2070, 4
      %v2083 = vrot.slane %v2071, 4
      %v2084 = vsel %vm592, %v2080, %v2083
      %v2085 = vrot.slane %v2072, 4
      %v2086 = vsel %vm592, %v2081, %v2085
      %v2087 = vrot.slane %v2073, 4
      %v2088 = vsel %vm592, %v2082, %v2087
      %2089 = vrot.lane.b32.xlu0 %v2080, 111
      %v2090 = vpop.permute.xlu0 %2089
      %2091 = vrot.lane.b32.xlu0 %v2081, 111
      %v2092 = vpop.permute.xlu0 %2091
      %2093 = vrot.lane.b32.xlu0 %v2082, 111
      %v2094 = vpop.permute.xlu0 %2093
      %2095 = vrot.lane.b32.xlu0 %v2084, 111
      %v2096 = vpop.permute.xlu0 %2095
      %2097 = vrot.lane.b32.xlu0 %v2086, 111
      %v2098 = vpop.permute.xlu0 %2097
      %2099 = vrot.lane.b32.xlu0 %v2088, 111
      %v2100 = vpop.permute.xlu0 %2099
      %2101 = vrot.lane.b32.xlu0 %v2083, 111
      %v2102 = vpop.permute.xlu0 %2101
      %2103 = vrot.lane.b32.xlu0 %v2085, 111
      %v2104 = vpop.permute.xlu0 %2103
      %2105 = vrot.lane.b32.xlu0 %v2087, 111
      %v2106 = vpop.permute.xlu0 %2105
      %v2107 = vsel %vm502, %v2090, %v2092
      %v2108 = vsel %vm502, %v2092, %v2094
      %v2109 = vsel %vm502, %v2096, %v2098
      %v2110 = vsel %vm502, %v2098, %v2100
      %v2111 = vsel %vm502, %v2102, %v2104
      %v2112 = vsel %vm502, %v2104, %v2106
      %2122 = vst [vmem:[#allocation3 + $0x330] sm:$0xf0] %v2107
      %2123 = vst [vmem:[#allocation3 + $0x338] sm:$0xf0] %v2108
      %2124 = vst.msk [vmem:[#allocation3 + $0x340] sm:$0xf0] %vm402, %v2094
      %2125 = vst [vmem:[#allocation3 + $0x348] sm:$0xff] %v2109
      %2126 = vst [vmem:[#allocation3 + $0x350] sm:$0xff] %v2110
      %2127 = vst.msk [vmem:[#allocation3 + $0x358] sm:$0xff] %vm311, %v2100
      %2128 = vst [vmem:[#allocation3 + $0x360] sm:$0xf] %v2111
      %2129 = vst [vmem:[#allocation3 + $0x368] sm:$0xf] %v2112
      %2130 = vst.msk [vmem:[#allocation3 + $0x370] sm:$0xf] %vm333, %v2106
      %v2131 = vld [vmem:[#allocation2 + $0x8] sm:$0xff]
      %v2132 = vld [vmem:[#allocation2 + $0x10] sm:$0xff]
      %v2133 = vld [vmem:[#allocation2 + $0x18] sm:$0xff]
      %v2134 = vld [vmem:[#allocation2 + $0x30] sm:$0xff]
      %v2135 = vld [vmem:[#allocation2 + $0x38] sm:$0xff]
      %v2136 = vld [vmem:[#allocation2 + $0x40] sm:$0xff]
      %v2143 = vrot.slane %v2131, 4
      %v2144 = vrot.slane %v2132, 4
      %v2145 = vrot.slane %v2133, 4
      %v2146 = vrot.slane %v2134, 4
      %v2147 = vsel %vm592, %v2143, %v2146
      %v2148 = vrot.slane %v2135, 4
      %v2149 = vsel %vm592, %v2144, %v2148
      %v2150 = vrot.slane %v2136, 4
      %v2151 = vsel %vm592, %v2145, %v2150
      %2152 = vrot.lane.b32.xlu0 %v2143, 110
      %v2153 = vpop.permute.xlu0 %2152
      %2154 = vrot.lane.b32.xlu0 %v2144, 110
      %v2155 = vpop.permute.xlu0 %2154
      %2156 = vrot.lane.b32.xlu0 %v2145, 110
      %v2157 = vpop.permute.xlu0 %2156
      %2158 = vrot.lane.b32.xlu0 %v2147, 110
      %v2159 = vpop.permute.xlu0 %2158
      %2160 = vrot.lane.b32.xlu0 %v2149, 110
      %v2161 = vpop.permute.xlu0 %2160
      %2162 = vrot.lane.b32.xlu0 %v2151, 110
      %v2163 = vpop.permute.xlu0 %2162
      %2164 = vrot.lane.b32.xlu0 %v2146, 110
      %v2165 = vpop.permute.xlu0 %2164
      %2166 = vrot.lane.b32.xlu0 %v2148, 110
      %v2167 = vpop.permute.xlu0 %2166
      %2168 = vrot.lane.b32.xlu0 %v2150, 110
      %v2169 = vpop.permute.xlu0 %2168
      %v2170 = vsel %vm526, %v2153, %v2155
      %v2171 = vsel %vm526, %v2155, %v2157
      %v2172 = vsel %vm526, %v2159, %v2161
      %v2173 = vsel %vm526, %v2161, %v2163
      %v2174 = vsel %vm526, %v2165, %v2167
      %v2175 = vsel %vm526, %v2167, %v2169
      %2185 = vst [vmem:[#allocation3 + $0x360] sm:$0xf0] %v2170
      %2186 = vst [vmem:[#allocation3 + $0x368] sm:$0xf0] %v2171
      %2187 = vst.msk [vmem:[#allocation3 + $0x370] sm:$0xf0] %vm402, %v2157
      %2188 = vst [vmem:[#allocation3 + $0x378] sm:$0xff] %v2172
      %2189 = vst [vmem:[#allocation3 + $0x380] sm:$0xff] %v2173
      %2190 = vst.msk [vmem:[#allocation3 + $0x388] sm:$0xff] %vm311, %v2163
      %2191 = vst [vmem:[#allocation3 + $0x390] sm:$0xf] %v2174
      %2192 = vst [vmem:[#allocation3 + $0x398] sm:$0xf] %v2175
      %2193 = vst.msk [vmem:[#allocation3 + $0x3a0] sm:$0xf] %vm333, %v2169
      %v2194 = vld [vmem:[#allocation2 + $0x8] sm:$0xff]
      %v2195 = vld [vmem:[#allocation2 + $0x10] sm:$0xff]
      %v2196 = vld [vmem:[#allocation2 + $0x18] sm:$0xff]
      %v2197 = vld [vmem:[#allocation2 + $0x30] sm:$0xff]
      %v2198 = vld [vmem:[#allocation2 + $0x38] sm:$0xff]
      %v2199 = vld [vmem:[#allocation2 + $0x40] sm:$0xff]
      %v2206 = vrot.slane %v2194, 4
      %v2207 = vrot.slane %v2195, 4
      %v2208 = vrot.slane %v2196, 4
      %v2209 = vrot.slane %v2197, 4
      %v2210 = vsel %vm592, %v2206, %v2209
      %v2211 = vrot.slane %v2198, 4
      %v2212 = vsel %vm592, %v2207, %v2211
      %v2213 = vrot.slane %v2199, 4
      %v2214 = vsel %vm592, %v2208, %v2213
      %2215 = vrot.lane.b32.xlu0 %v2206, 109
      %v2216 = vpop.permute.xlu0 %2215
      %2217 = vrot.lane.b32.xlu0 %v2207, 109
      %v2218 = vpop.permute.xlu0 %2217
      %2219 = vrot.lane.b32.xlu0 %v2208, 109
      %v2220 = vpop.permute.xlu0 %2219
      %2221 = vrot.lane.b32.xlu0 %v2210, 109
      %v2222 = vpop.permute.xlu0 %2221
      %2223 = vrot.lane.b32.xlu0 %v2212, 109
      %v2224 = vpop.permute.xlu0 %2223
      %2225 = vrot.lane.b32.xlu0 %v2214, 109
      %v2226 = vpop.permute.xlu0 %2225
      %2227 = vrot.lane.b32.xlu0 %v2209, 109
      %v2228 = vpop.permute.xlu0 %2227
      %2229 = vrot.lane.b32.xlu0 %v2211, 109
      %v2230 = vpop.permute.xlu0 %2229
      %2231 = vrot.lane.b32.xlu0 %v2213, 109
      %v2232 = vpop.permute.xlu0 %2231
      %v2233 = vsel %vm547, %v2216, %v2218
      %v2234 = vsel %vm547, %v2218, %v2220
      %v2235 = vsel %vm547, %v2222, %v2224
      %v2236 = vsel %vm547, %v2224, %v2226
      %v2237 = vsel %vm547, %v2228, %v2230
      %v2238 = vsel %vm547, %v2230, %v2232
      %2248 = vst [vmem:[#allocation3 + $0x390] sm:$0xf0] %v2233
      %2249 = vst [vmem:[#allocation3 + $0x398] sm:$0xf0] %v2234
      %2250 = vst.msk [vmem:[#allocation3 + $0x3a0] sm:$0xf0] %vm402, %v2220
      %2251 = vst [vmem:[#allocation3 + $0x3a8] sm:$0xff] %v2235
      %2252 = vst [vmem:[#allocation3 + $0x3b0] sm:$0xff] %v2236
      %2253 = vst.msk [vmem:[#allocation3 + $0x3b8] sm:$0xff] %vm311, %v2226
      %2254 = vst [vmem:[#allocation3 + $0x3c0] sm:$0xf] %v2237
      %2255 = vst [vmem:[#allocation3 + $0x3c8] sm:$0xf] %v2238
      %2256 = vst.msk [vmem:[#allocation3 + $0x3d0] sm:$0xf] %vm333, %v2232
      %v2257 = vld [vmem:[%s3] sm:$0xff]
      %v2258 = vld [vmem:[%s3 + $0x8] sm:$0xff]
      %v2259 = vld [vmem:[%s3 + $0x10] sm:$0xff]
      %v2260 = vld [vmem:[%s3 + $0x18] sm:$0xff]
      %v2261 = vld [vmem:[%s3 + $0x20] sm:$0xff]
      %v2262 = vld [vmem:[%s3 + $0x28] sm:$0xff]
      %v2263 = vld [vmem:[#allocation3] sm:$0xff]
      %v2264 = vld [vmem:[#allocation3 + $0x8] sm:$0xff]
      %v2265 = vld [vmem:[#allocation3 + $0x10] sm:$0xff]
      %v2266 = vld [vmem:[#allocation3 + $0x18] sm:$0xff]
      %v2267 = vld [vmem:[#allocation3 + $0x20] sm:$0xff]
      %v2268 = vld [vmem:[#allocation3 + $0x28] sm:$0xff]
      %v2269 = vld [vmem:[#allocation3 + $0x30] sm:$0xff]
      %v2270 = vld [vmem:[#allocation3 + $0x38] sm:$0xff]
      %v2271 = vld [vmem:[#allocation3 + $0x40] sm:$0xff]
      %v2272 = vld [vmem:[#allocation3 + $0x48] sm:$0xff]
      %v2273 = vld [vmem:[#allocation3 + $0x50] sm:$0xff]
      %v2274 = vld [vmem:[#allocation3 + $0x58] sm:$0xff]
      %v2275 = vld [vmem:[#allocation3 + $0x60] sm:$0xff]
      %v2276 = vld [vmem:[#allocation3 + $0x68] sm:$0xff]
      %v2277 = vld [vmem:[#allocation3 + $0x70] sm:$0xff]
      %v2278 = vld [vmem:[#allocation3 + $0x78] sm:$0xff]
      %v2279 = vld [vmem:[#allocation3 + $0x80] sm:$0xff]
      %v2280 = vld [vmem:[#allocation3 + $0x88] sm:$0xff]
      %v2281 = vld [vmem:[#allocation3 + $0x90] sm:$0xff]
      %v2282 = vld [vmem:[#allocation3 + $0x98] sm:$0xff]
      %v2283 = vld [vmem:[#allocation3 + $0xa0] sm:$0xff]
      %v2284 = vld [vmem:[#allocation3 + $0xa8] sm:$0xff]
      %v2285 = vld [vmem:[#allocation3 + $0xb0] sm:$0xff]
      %v2286 = vld [vmem:[#allocation3 + $0xb8] sm:$0xff]
      %v2287 = vld [vmem:[#allocation3 + $0xc0] sm:$0xff]
      %v2288 = vld [vmem:[#allocation3 + $0xc8] sm:$0xff]
      %v2289 = vld [vmem:[#allocation3 + $0xd0] sm:$0xff]
      %v2290 = vld [vmem:[#allocation3 + $0xd8] sm:$0xff]
      %v2291 = vld [vmem:[#allocation3 + $0xe0] sm:$0xff]
      %v2292 = vld [vmem:[#allocation3 + $0xe8] sm:$0xff]
      %v2293 = vld [vmem:[#allocation3 + $0xf0] sm:$0xff]
      %v2294 = vld [vmem:[#allocation3 + $0xf8] sm:$0xff]
      %v2295 = vld [vmem:[#allocation3 + $0x100] sm:$0xff]
      %v2296 = vld [vmem:[#allocation3 + $0x108] sm:$0xff]
      %v2297 = vld [vmem:[#allocation3 + $0x110] sm:$0xff]
      %v2298 = vld [vmem:[#allocation3 + $0x118] sm:$0xff]
      %v2299 = vld [vmem:[#allocation3 + $0x120] sm:$0xff]
      %v2300 = vld [vmem:[#allocation3 + $0x128] sm:$0xff]
      %v2301 = vld [vmem:[#allocation3 + $0x130] sm:$0xff]
      %v2302 = vld [vmem:[#allocation3 + $0x138] sm:$0xff]
      %v2303 = vld [vmem:[#allocation3 + $0x140] sm:$0xff]
      %v2304 = vld [vmem:[#allocation3 + $0x148] sm:$0xff]
      %v2305 = vld [vmem:[#allocation3 + $0x150] sm:$0xff]
      %v2306 = vld [vmem:[#allocation3 + $0x158] sm:$0xff]
      %v2307 = vld [vmem:[#allocation3 + $0x160] sm:$0xff]
      %v2308 = vld [vmem:[#allocation3 + $0x168] sm:$0xff]
      %v2309 = vld [vmem:[#allocation3 + $0x170] sm:$0xff]
      %v2310 = vld [vmem:[#allocation3 + $0x178] sm:$0xff]
      %v2311 = vld [vmem:[#allocation3 + $0x180] sm:$0xff]
      %v2312 = vld [vmem:[#allocation3 + $0x188] sm:$0xff]
      %v2313 = vld [vmem:[#allocation3 + $0x190] sm:$0xff]
      %v2314 = vld [vmem:[#allocation3 + $0x198] sm:$0xff]
      %v2315 = vld [vmem:[#allocation3 + $0x1a0] sm:$0xff]
      %v2316 = vld [vmem:[#allocation3 + $0x1a8] sm:$0xff]
      %v2317 = vld [vmem:[#allocation3 + $0x1b0] sm:$0xff]
      %v2318 = vld [vmem:[#allocation3 + $0x1b8] sm:$0xff]
      %v2319 = vld [vmem:[#allocation3 + $0x1c0] sm:$0xff]
      %v2320 = vld [vmem:[#allocation3 + $0x1c8] sm:$0xff]
      %v2321 = vld [vmem:[#allocation3 + $0x1d0] sm:$0xff]
      %v2322 = vld [vmem:[#allocation3 + $0x1d8] sm:$0xff]
      %v2323 = vld [vmem:[#allocation3 + $0x1e0] sm:$0xff]
      %v2324 = vld [vmem:[#allocation3 + $0x1e8] sm:$0xff]
      %v2325 = vld [vmem:[#allocation3 + $0x1f0] sm:$0xff]
      %v2326 = vld [vmem:[#allocation3 + $0x1f8] sm:$0xff]
      %v2327 = vld [vmem:[#allocation3 + $0x200] sm:$0xff]
      %v2328 = vld [vmem:[#allocation3 + $0x208] sm:$0xff]
      %v2329 = vld [vmem:[#allocation3 + $0x210] sm:$0xff]
      %v2330 = vld [vmem:[#allocation3 + $0x218] sm:$0xff]
      %v2331 = vld [vmem:[#allocation3 + $0x220] sm:$0xff]
      %v2332 = vld [vmem:[#allocation3 + $0x228] sm:$0xff]
      %v2333 = vld [vmem:[#allocation3 + $0x230] sm:$0xff]
      %v2334 = vld [vmem:[#allocation3 + $0x238] sm:$0xff]
      %v2335 = vld [vmem:[#allocation3 + $0x240] sm:$0xff]
      %v2336 = vld [vmem:[#allocation3 + $0x248] sm:$0xff]
      %v2337 = vld [vmem:[#allocation3 + $0x250] sm:$0xff]
      %v2338 = vld [vmem:[#allocation3 + $0x258] sm:$0xff]
      %v2339 = vld [vmem:[#allocation3 + $0x260] sm:$0xff]
      %v2340 = vld [vmem:[#allocation3 + $0x268] sm:$0xff]
      %v2341 = vld [vmem:[#allocation3 + $0x270] sm:$0xff]
      %v2342 = vld [vmem:[#allocation3 + $0x278] sm:$0xff]
      %v2343 = vld [vmem:[#allocation3 + $0x280] sm:$0xff]
      %v2344 = vld [vmem:[#allocation3 + $0x288] sm:$0xff]
      %v2345 = vld [vmem:[#allocation3 + $0x290] sm:$0xff]
      %v2346 = vld [vmem:[#allocation3 + $0x298] sm:$0xff]
      %v2347 = vld [vmem:[#allocation3 + $0x2a0] sm:$0xff]
      %v2348 = vld [vmem:[#allocation3 + $0x2a8] sm:$0xff]
      %v2349 = vld [vmem:[#allocation3 + $0x2b0] sm:$0xff]
      %v2350 = vld [vmem:[#allocation3 + $0x2b8] sm:$0xff]
      %v2351 = vld [vmem:[#allocation3 + $0x2c0] sm:$0xff]
      %v2352 = vld [vmem:[#allocation3 + $0x2c8] sm:$0xff]
      %v2353 = vld [vmem:[#allocation3 + $0x2d0] sm:$0xff]
      %v2354 = vld [vmem:[#allocation3 + $0x2d8] sm:$0xff]
      %v2355 = vld [vmem:[#allocation3 + $0x2e0] sm:$0xff]
      %v2356 = vld [vmem:[#allocation3 + $0x2e8] sm:$0xff]
      %v2357 = vld [vmem:[#allocation3 + $0x2f0] sm:$0xff]
      %v2358 = vld [vmem:[#allocation3 + $0x2f8] sm:$0xff]
      %v2359 = vld [vmem:[#allocation3 + $0x300] sm:$0xff]
      %v2360 = vld [vmem:[#allocation3 + $0x308] sm:$0xff]
      %v2361 = vld [vmem:[#allocation3 + $0x310] sm:$0xff]
      %v2362 = vld [vmem:[#allocation3 + $0x318] sm:$0xff]
      %v2363 = vld [vmem:[#allocation3 + $0x320] sm:$0xff]
      %v2364 = vld [vmem:[#allocation3 + $0x328] sm:$0xff]
      %v2365 = vld [vmem:[#allocation3 + $0x330] sm:$0xff]
      %v2366 = vld [vmem:[#allocation3 + $0x338] sm:$0xff]
      %v2367 = vld [vmem:[#allocation3 + $0x340] sm:$0xff]
      %v2368 = vld [vmem:[#allocation3 + $0x348] sm:$0xff]
      %v2369 = vld [vmem:[#allocation3 + $0x350] sm:$0xff]
      %v2370 = vld [vmem:[#allocation3 + $0x358] sm:$0xff]
      %v2371 = vld [vmem:[#allocation3 + $0x360] sm:$0xff]
      %v2372 = vld [vmem:[#allocation3 + $0x368] sm:$0xff]
      %v2373 = vld [vmem:[#allocation3 + $0x370] sm:$0xff]
      %v2374 = vld [vmem:[#allocation3 + $0x378] sm:$0xff]
      %v2375 = vld [vmem:[#allocation3 + $0x380] sm:$0xff]
      %v2376 = vld [vmem:[#allocation3 + $0x388] sm:$0xff]
      %v2377 = vld [vmem:[#allocation3 + $0x390] sm:$0xff]
      %v2378 = vld [vmem:[#allocation3 + $0x398] sm:$0xff]
      %v2379 = vld [vmem:[#allocation3 + $0x3a0] sm:$0xff]
      %v2380 = vld [vmem:[#allocation3 + $0x3a8] sm:$0xff]
      %v2381 = vld [vmem:[#allocation3 + $0x3b0] sm:$0xff]
      %v2382 = vld [vmem:[#allocation3 + $0x3b8] sm:$0xff]
      %v2383 = vld [vmem:[#allocation3 + $0x3c0] sm:$0xf]
      %v2384 = vld [vmem:[#allocation3 + $0x3c8] sm:$0xf]
      %v2385 = vld [vmem:[#allocation3 + $0x3d0] sm:$0xf]
      %v2386 = vld [vmem:[%s6] sm:$0xff]
      %v2387 = vld [vmem:[%s6 + $0x8] sm:$0xff]
      %2389 = vset.pattern.permute.xlu0 0
      %2390 = vperm.xlu0 %2389, %v2386
      %v2391 = vpop.permute.xlu0 %2390
      %2394 = vset.pattern.permute.xlu0 0
      %2395 = vperm.xlu0 %2394, %v2387
      %v2396 = vpop.permute.xlu0 %2395
      %v2399 = vsel %vm311, %v2259, 0
      %v2402 = vsel %vm311, %v2262, 0
      %v2405 = vsel %vm592, %v2383, 0
      %v2408 = vsel %vm592, %v2384, 0
      %v2411 = vsel %vm592, %v2385, 0
      %2413 = vmatpush.msra.mxu0 %v2308
      %2414 = vmatpush.msra.mxu0 %v2305
      %2415 = vmatpush.msra.mxu0 %v2302
      %2416 = vmatpush.msra.mxu0 %v2299
      %2417 = vmatpush.msra.mxu0 %v2296
      %2418 = vmatpush.msra.mxu0 %v2293
      %2419 = vmatpush.msra.mxu0 %v2290
      %2420 = vmatpush.msra.mxu0 %v2287
      %2421 = vmatpush.msra.mxu0 %v2284
      %2422 = vmatpush.msra.mxu0 %v2281
      %2423 = vmatpush.msra.mxu0 %v2278
      %2424 = vmatpush.msra.mxu0 %v2275
      %2425 = vmatpush.msra.mxu0 %v2272
      %2426 = vmatpush.msra.mxu0 %v2269
      %2427 = vmatpush.msra.mxu0 %v2266
      %2428 = vmatpush.msra.mxu0 %v2263
      %2429 = vmatmul.f32.gmra.mxu0 %v2257
      %v2430 = vpop.f32.mrf.mxu0
      %v2431 = vadd.f32 %v2391, %v2430
      %2432 = vmatmul.f32.gmra.mxu0 %v2260
      %v2433 = vpop.f32.mrf.mxu0
      %v2434 = vadd.f32 %v2396, %v2433
      %2435 = vdwg.mxu0
      %2436 = vmatpush.msra.mxu0 %v2356
      %2437 = vmatpush.msra.mxu0 %v2353
      %2438 = vmatpush.msra.mxu0 %v2350
      %2439 = vmatpush.msra.mxu0 %v2347
      %2440 = vmatpush.msra.mxu0 %v2344
      %2441 = vmatpush.msra.mxu0 %v2341
      %2442 = vmatpush.msra.mxu0 %v2338
      %2443 = vmatpush.msra.mxu0 %v2335
      %2444 = vmatpush.msra.mxu0 %v2332
      %2445 = vmatpush.msra.mxu0 %v2329
      %2446 = vmatpush.msra.mxu0 %v2326
      %2447 = vmatpush.msra.mxu0 %v2323
      %2448 = vmatpush.msra.mxu0 %v2320
      %2449 = vmatpush.msra.mxu0 %v2317
      %2450 = vmatpush.msra.mxu0 %v2314
      %2451 = vmatpush.msra.mxu0 %v2311
      %2452 = vmatmul.f32.gmra.mxu0 %v2258
      %v2453 = vpop.f32.mrf.mxu0
      %v2454 = vadd.f32 %v2431, %v2453
      %2455 = vmatmul.f32.gmra.mxu0 %v2261
      %v2456 = vpop.f32.mrf.mxu0
      %v2457 = vadd.f32 %v2434, %v2456
      %2458 = vdwg.mxu0
      %2459 = vmatpush.msra.mxu0 0.0
      %2460 = vmatpush.msra.mxu0 0.0
      %2461 = vmatpush.msra.mxu0 0.0
      %2462 = vmatpush.msra.mxu0 0.0
      %2463 = vmatpush.msra.mxu0 0.0
      %2464 = vmatpush.msra.mxu0 0.0
      %2465 = vmatpush.msra.mxu0 0.0
      %2466 = vmatpush.msra.mxu0 %v2405
      %2467 = vmatpush.msra.mxu0 %v2380
      %2468 = vmatpush.msra.mxu0 %v2377
      %2469 = vmatpush.msra.mxu0 %v2374
      %2470 = vmatpush.msra.mxu0 %v2371
      %2471 = vmatpush.msra.mxu0 %v2368
      %2472 = vmatpush.msra.mxu0 %v2365
      %2473 = vmatpush.msra.mxu0 %v2362
      %2474 = vmatpush.msra.mxu0 %v2359
      %2475 = vmatmul.f32.gmra.mxu0 %v2399
      %v2476 = vpop.f32.mrf.mxu0
      %v2477 = vadd.f32 %v2454, %v2476
      %2478 = vmatmul.f32.gmra.mxu0 %v2402
      %v2479 = vpop.f32.mrf.mxu0
      %v2480 = vadd.f32 %v2457, %v2479
      %2481 = vdwg.mxu0
      %2482 = vmatpush.msra.mxu0 %v2309
      %2483 = vmatpush.msra.mxu0 %v2306
      %2484 = vmatpush.msra.mxu0 %v2303
      %2485 = vmatpush.msra.mxu0 %v2300
      %2486 = vmatpush.msra.mxu0 %v2297
      %2487 = vmatpush.msra.mxu0 %v2294
      %2488 = vmatpush.msra.mxu0 %v2291
      %2489 = vmatpush.msra.mxu0 %v2288
      %2490 = vmatpush.msra.mxu0 %v2285
      %2491 = vmatpush.msra.mxu0 %v2282
      %2492 = vmatpush.msra.mxu0 %v2279
      %2493 = vmatpush.msra.mxu0 %v2276
      %2494 = vmatpush.msra.mxu0 %v2273
      %2495 = vmatpush.msra.mxu0 %v2270
      %2496 = vmatpush.msra.mxu0 %v2267
      %2497 = vmatpush.msra.mxu0 %v2264
      %2498 = vmatmul.f32.gmra.mxu0 %v2257
      %v2499 = vpop.f32.mrf.mxu0
      %v2500 = vadd.f32 %v2391, %v2499
      %2501 = vmatmul.f32.gmra.mxu0 %v2260
      %v2502 = vpop.f32.mrf.mxu0
      %v2503 = vadd.f32 %v2396, %v2502
      %2504 = vdwg.mxu0
      %2505 = vmatpush.msra.mxu0 %v2357
      %2506 = vmatpush.msra.mxu0 %v2354
      %2507 = vmatpush.msra.mxu0 %v2351
      %2508 = vmatpush.msra.mxu0 %v2348
      %2509 = vmatpush.msra.mxu0 %v2345
      %2510 = vmatpush.msra.mxu0 %v2342
      %2511 = vmatpush.msra.mxu0 %v2339
      %2512 = vmatpush.msra.mxu0 %v2336
      %2513 = vmatpush.msra.mxu0 %v2333
      %2514 = vmatpush.msra.mxu0 %v2330
      %2515 = vmatpush.msra.mxu0 %v2327
      %2516 = vmatpush.msra.mxu0 %v2324
      %2517 = vmatpush.msra.mxu0 %v2321
      %2518 = vmatpush.msra.mxu0 %v2318
      %2519 = vmatpush.msra.mxu0 %v2315
      %2520 = vmatpush.msra.mxu0 %v2312
      %2521 = vmatmul.f32.gmra.mxu0 %v2258
      %v2522 = vpop.f32.mrf.mxu0
      %v2523 = vadd.f32 %v2500, %v2522
      %2524 = vmatmul.f32.gmra.mxu0 %v2261
      %v2525 = vpop.f32.mrf.mxu0
      %v2526 = vadd.f32 %v2503, %v2525
      %2527 = vdwg.mxu0
      %2528 = vmatpush.msra.mxu0 0.0
      %2529 = vmatpush.msra.mxu0 0.0
      %2530 = vmatpush.msra.mxu0 0.0
      %2531 = vmatpush.msra.mxu0 0.0
      %2532 = vmatpush.msra.mxu0 0.0
      %2533 = vmatpush.msra.mxu0 0.0
      %2534 = vmatpush.msra.mxu0 0.0
      %2535 = vmatpush.msra.mxu0 %v2408
      %2536 = vmatpush.msra.mxu0 %v2381
      %2537 = vmatpush.msra.mxu0 %v2378
      %2538 = vmatpush.msra.mxu0 %v2375
      %2539 = vmatpush.msra.mxu0 %v2372
      %2540 = vmatpush.msra.mxu0 %v2369
      %2541 = vmatpush.msra.mxu0 %v2366
      %2542 = vmatpush.msra.mxu0 %v2363
      %2543 = vmatpush.msra.mxu0 %v2360
      %2544 = vmatmul.f32.gmra.mxu0 %v2399
      %v2545 = vpop.f32.mrf.mxu0
      %v2546 = vadd.f32 %v2523, %v2545
      %2547 = vmatmul.f32.gmra.mxu0 %v2402
      %v2548 = vpop.f32.mrf.mxu0
      %v2549 = vadd.f32 %v2526, %v2548
      %2550 = vdwg.mxu0
      %2551 = vmatpush.msra.mxu0 %v2310
      %2552 = vmatpush.msra.mxu0 %v2307
      %2553 = vmatpush.msra.mxu0 %v2304
      %2554 = vmatpush.msra.mxu0 %v2301
      %2555 = vmatpush.msra.mxu0 %v2298
      %2556 = vmatpush.msra.mxu0 %v2295
      %2557 = vmatpush.msra.mxu0 %v2292
      %2558 = vmatpush.msra.mxu0 %v2289
      %2559 = vmatpush.msra.mxu0 %v2286
      %2560 = vmatpush.msra.mxu0 %v2283
      %2561 = vmatpush.msra.mxu0 %v2280
      %2562 = vmatpush.msra.mxu0 %v2277
      %2563 = vmatpush.msra.mxu0 %v2274
      %2564 = vmatpush.msra.mxu0 %v2271
      %2565 = vmatpush.msra.mxu0 %v2268
      %2566 = vmatpush.msra.mxu0 %v2265
      %2567 = vmatmul.f32.gmra.mxu0 %v2257
      %v2568 = vpop.f32.mrf.mxu0
      %v2569 = vadd.f32 %v2391, %v2568
      %2570 = vmatmul.f32.gmra.mxu0 %v2260
      %v2571 = vpop.f32.mrf.mxu0
      %v2572 = vadd.f32 %v2396, %v2571
      %2573 = vdwg.mxu0
      %2574 = vmatpush.msra.mxu0 %v2358
      %2575 = vmatpush.msra.mxu0 %v2355
      %2576 = vmatpush.msra.mxu0 %v2352
      %2577 = vmatpush.msra.mxu0 %v2349
      %2578 = vmatpush.msra.mxu0 %v2346
      %2579 = vmatpush.msra.mxu0 %v2343
      %2580 = vmatpush.msra.mxu0 %v2340
      %2581 = vmatpush.msra.mxu0 %v2337
      %2582 = vmatpush.msra.mxu0 %v2334
      %2583 = vmatpush.msra.mxu0 %v2331
      %2584 = vmatpush.msra.mxu0 %v2328
      %2585 = vmatpush.msra.mxu0 %v2325
      %2586 = vmatpush.msra.mxu0 %v2322
      %2587 = vmatpush.msra.mxu0 %v2319
      %2588 = vmatpush.msra.mxu0 %v2316
      %2589 = vmatpush.msra.mxu0 %v2313
      %2590 = vmatmul.f32.gmra.mxu0 %v2258
      %v2591 = vpop.f32.mrf.mxu0
      %v2592 = vadd.f32 %v2569, %v2591
      %2593 = vmatmul.f32.gmra.mxu0 %v2261
      %v2594 = vpop.f32.mrf.mxu0
      %v2595 = vadd.f32 %v2572, %v2594
      %2596 = vdwg.mxu0
      %2597 = vmatpush.msra.mxu0 0.0
      %2598 = vmatpush.msra.mxu0 0.0
      %2599 = vmatpush.msra.mxu0 0.0
      %2600 = vmatpush.msra.mxu0 0.0
      %2601 = vmatpush.msra.mxu0 0.0
      %2602 = vmatpush.msra.mxu0 0.0
      %2603 = vmatpush.msra.mxu0 0.0
      %2604 = vmatpush.msra.mxu0 %v2411
      %2605 = vmatpush.msra.mxu0 %v2382
      %2606 = vmatpush.msra.mxu0 %v2379
      %2607 = vmatpush.msra.mxu0 %v2376
      %2608 = vmatpush.msra.mxu0 %v2373
      %2609 = vmatpush.msra.mxu0 %v2370
      %2610 = vmatpush.msra.mxu0 %v2367
      %2611 = vmatpush.msra.mxu0 %v2364
      %2612 = vmatpush.msra.mxu0 %v2361
      %2613 = vmatmul.f32.gmra.mxu0 %v2399
      %v2614 = vpop.f32.mrf.mxu0
      %v2615 = vadd.f32 %v2592, %v2614
      %2616 = vmatmul.f32.gmra.mxu0 %v2402
      %v2617 = vpop.f32.mrf.mxu0
      %v2618 = vadd.f32 %v2595, %v2617
      %2619 = vdwg.mxu0
      %vm2620 = vcmp.gt.f32.partialorder %v2477, 0.0
      %vm2621 = vcmp.gt.f32.partialorder %v2546, 0.0
      %vm2622 = vcmp.gt.f32.partialorder %v2615, 0.0
      %vm2623 = vcmp.gt.f32.partialorder %v2480, 0.0
      %vm2624 = vcmp.gt.f32.partialorder %v2549, 0.0
      %vm2625 = vcmp.gt.f32.partialorder %v2618, 0.0
      %v2626 = vmul.f32 %v2477, 0.01
      %v2627 = vmul.f32 %v2546, 0.01
      %v2628 = vmul.f32 %v2615, 0.01
      %v2629 = vmul.f32 %v2480, 0.01
      %v2630 = vmul.f32 %v2549, 0.01
      %v2631 = vmul.f32 %v2618, 0.01
      %v2632 = vsel %vm2620, %v2477, %v2626
      %v2633 = vsel %vm2621, %v2546, %v2627
      %v2634 = vsel %vm2622, %v2615, %v2628
      %v2635 = vsel %vm2623, %v2480, %v2629
      %v2636 = vsel %vm2624, %v2549, %v2630
      %v2637 = vsel %vm2625, %v2618, %v2631
      %v2638 = vmul.f32 %v2632, %v690
      %v2639 = vmul.f32 %v2633, %v691
      %v2640 = vmul.f32 %v2634, %v692
      %v2641 = vmul.f32 %v2635, %v690
      %v2642 = vmul.f32 %v2636, %v691
      %v2643 = vmul.f32 %v2637, %v692
      %v2650 = vrot.slane %v2638, 4
      %v2651 = vrot.slane %v2639, 4
      %v2652 = vrot.slane %v2640, 4
      %v2653 = vrot.slane %v2641, 4
      %v2654 = vsel %vm592, %v2650, %v2653
      %v2655 = vrot.slane %v2642, 4
      %v2656 = vsel %vm592, %v2651, %v2655
      %v2657 = vrot.slane %v2643, 4
      %v2658 = vsel %vm592, %v2652, %v2657
      %2668 = vst [vmem:[%s305 + $0x60] sm:$0xf0] %v2650
      %2669 = vst [vmem:[%s305 + $0x68] sm:$0xf0] %v2651
      %2670 = vst.msk [vmem:[%s305 + $0x70] sm:$0xf0] %vm402, %v2652
      %2671 = vst [vmem:[%s305 + $0x78] sm:$0xff] %v2654
      %2672 = vst [vmem:[%s305 + $0x80] sm:$0xff] %v2656
      %2673 = vst.msk [vmem:[%s305 + $0x88] sm:$0xff] %vm311, %v2658
      %2674 = vst [vmem:[%s305 + $0x90] sm:$0xf] %v2653
      %2675 = vst [vmem:[%s305 + $0x98] sm:$0xf] %v2655
      %2676 = vst.msk [vmem:[%s305 + $0xa0] sm:$0xf] %vm333, %v2657
      %p2677 = scmp.lt.s32.totalorder %s19, 1
      %s2678 = scalar_select %p2677, %s19, 1
      %s2679 = smul.addr %s2678, 21
      %s2680 = smul.addr %s2679, 8
      %s2681 = scalar_lea.vmem %s8, %s2680
      // Predicated region
      $region53: #{dense_block_forward.1} parent=51 // pred_check
        %p2682 = pneg %p210
      $region54: #{dense_block_forward.1} parent=51 // pred_check_branch
        %2684 = sbr.rel (%p2682) target = $region56
      $region55: #{dense_block_forward.1} parent=51 // pred_region
        _
      $region56: #{dense_block_forward.1} parent=51 // pred_fallthru
        _
    $region52: #{dense_block_forward.1} parent=5 // pred_fallthru
      _
    %p2685 = scmp.le.s32.totalorder 2, %s14
    // Predicated region
    $region57: #{dense_block_forward.1} parent=5 // pred_check
      %p2686 = pneg %p2685
    $region58: #{dense_block_forward.1} parent=5 // pred_check_branch
      %2688 = sbr.rel (%p2686) target = $region60
    $region59: #{dense_block_forward.1} parent=5 // pred_region
      %s2689 = ssub.s32 %s14, 2
      // Predicated region
      $region61: #{dense_block_forward.1} parent=59 // pred_check
        %p2690 = pneg %p216
      $region62: #{dense_block_forward.1} parent=59 // pred_check_branch
        %2692 = sbr.rel (%p2690) target = $region64
      $region63: #{dense_block_forward.1} parent=59 // pred_region
        %p2693 = scmp.lt.s32.totalorder %s20, 1
        %s2694 = scalar_select %p2693, %s20, 1
        %s2695 = smul.addr %s2694, 21
        %s2696 = smul.addr %s2695, 8
        %s2697 = scalar_lea.vmem %s8, %s2696
      $region64: #{dense_block_forward.1} parent=59 // pred_fallthru
        _
    $region60: #{dense_block_forward.1} parent=5 // pred_fallthru
      _
  $region6: #{dense_block_forward.1} parent=0 // loop_footer
    %s18 = sadd.s32 1, %s14
  $region7: #{dense_block_forward.1} parent=0 // loop_footer_branch
    %13 = sbr.rel target = $region3
  $region8: #{dense_block_forward.1} parent=0 // loop_exit
    _

</llo_original>
